<compile_context>
chip_gen: v6e
topology: v6e:2x2x1
jax: 0.10.0
libtpu: 0.0.40
codegen_flags: <defaults>
</compile_context>

<pallas_src>
import math

import numpy as np
import jax
import jax.numpy as jnp
from jax.experimental import pallas as pl
from jax.experimental.pallas import tpu as pltpu

# ----- hyper-parameters (mirror opt.* / dicts in the PyTorch module) -----
MAX_LENG = 28          # opt.seq_length
WORD_VEC = 8           # opt.word_vec_size
NUM_FILTERS = 8        # opt.num_filters
FILTER_SIZE = 3        # opt.filter_sizes[0]
VOCAB = 50             # dicts['all'].size()
PAD_IDX = 0            # onmt.Constants.PAD
HID = 20               # hid_layer output
NCLS = 2               # logistic output

L = MAX_LENG + 2                       # 30: padded sequence length
CIN1 = 2 * WORD_VEC                    # 16: conv1 input channels
H1 = L - FILTER_SIZE + 1               # 28: conv1 output extent
HP1 = (H1 - 3) // 3 + 1                # 9 : pool1 output extent (floor)
H2 = HP1 - FILTER_SIZE + 1             # 7 : conv2 output extent
HP2 = (H2 - 3) // 3 + 1                # 2 : pool2 output extent (floor)
INS = HP2 * HP2 * NUM_FILTERS          # 32: == module's `ins`
K1 = FILTER_SIZE * FILTER_SIZE * CIN1          # 144: conv1 contraction
K2 = FILTER_SIZE * FILTER_SIZE * NUM_FILTERS   # 72 : conv2 contraction

# flattened lane-dense layout: each sample owns a SLAB of columns, col = h*RS + w
RS = 32                                # padded row stride (h,w padded 30 -> 32)
SLAB = RS * RS                         # 1024 columns per sample
D1 = (FILTER_SIZE - 1) * RS + (FILTER_SIZE - 1)        # 66 : max conv1/pool1 shift
D2 = 3 * ((FILTER_SIZE - 1) * RS + (FILTER_SIZE - 1))  # 198: max dilated conv2/pool2 shift


# ------------------------- fused Pallas kernel -------------------------

def _make_fused_kernel(bt):
    """conv1+tanh+pool1 -> conv2+tanh+pool2 -> flatten -> MLP -> softmax.

    The conv input arrives flattened as (CIN1, bt*SLAB): channels on sublanes,
    batch-major sample slabs of 1024 lane-dense columns (col = h*RS + w).
    Because w <= 29 < RS, every (dy,dx) spatial shift is a single lane offset
    dy*RS + dx shared by the whole batch tile; the stride-3 MaxPools use the
    dilated formulation so downstream accesses stay contiguous static slices.
    Garbage columns (h/w out of valid range, slab padding) are bounded by tanh
    and never read by any valid downstream position.
    """
    W0 = bt * SLAB
    W1 = W0 - D1          # conv1/tanh output width
    W2 = W1 - D1          # pool1 sliding-max (pre1) width
    W3 = W2 - D2          # dilated conv2/tanh (z) width
    W4 = W3 - D2          # dilated pool2 (pre2) width

    def kernel(x_ref, w1_ref, b1_ref, w2_ref, b2_ref,
               whr_ref, bh_ref, wl_ref, bl_ref, o_ref):
        f32 = jnp.float32
        x = x_ref[0]                                            # (CIN1, W0)

        # ---------- conv1: ONE 2-D im2col contraction (8,144)x(144,W1) ----------
        a1 = jnp.concatenate(
            [x[:, dy * RS + dx: dy * RS + dx + W1]
             for dy in range(FILTER_SIZE) for dx in range(FILTER_SIZE)],
            axis=0)                                             # (K1, W1)
        y1 = jnp.tanh(jnp.dot(w1_ref[...], a1, preferred_element_type=f32)
                      + b1_ref[...])                            # (F, W1)

        # ---------- pool1: sliding 3x3 max (stride handled by dilation later) ----------
        pre1 = y1[:, :W2]
        for dy in range(3):
            for dx in range(3):
                if dy == 0 and dx == 0:
                    continue
                d = dy * RS + dx
                pre1 = jnp.maximum(pre1, y1[:, d:d + W2])       # (F, W2)

        # ---------- conv2 (dilation 3 over pre1): ONE (8,72)x(72,W3) matmul ----------
        a2 = jnp.concatenate(
            [pre1[:, 3 * (dy * RS + dx): 3 * (dy * RS + dx) + W3]
             for dy in range(FILTER_SIZE) for dx in range(FILTER_SIZE)],
            axis=0)                                             # (K2, W3)
        z = jnp.tanh(jnp.dot(w2_ref[...], a2, preferred_element_type=f32)
                     + b2_ref[...])                             # (F, W3)
        # z at col (3u*RS + 3v) inside a slab == tanh(conv2(pool1)) at (u, v)

        # ---------- pool2 (dilated 3x3 max) ----------
        pre2 = z[:, :W4]
        for dy in range(3):
            for dx in range(3):
                if dy == 0 and dx == 0:
                    continue
                d = 3 * (dy * RS + dx)
                pre2 = jnp.maximum(pre2, z[:, d:d + W4])        # (F, W4)

        # ---------- flatten (NCHW order via pre-permuted whr) + batched MLP ----------
        # pooled outputs live at col = b*SLAB + 9*i*RS + 9*j; q rows = pos*F + f.
        # (only remaining per-batch unroll: 4 single-lane picks per sample)
        cols = []
        for b in range(bt):
            base = b * SLAB
            cols.append(jnp.concatenate(
                [pre2[:, base + 9 * i * RS + 9 * j: base + 9 * i * RS + 9 * j + 1]
                 for i in range(HP2) for j in range(HP2)], axis=0))   # (INS, 1)
        q = jnp.concatenate(cols, axis=1)                       # (INS, bt)

        hid = jnp.tanh(jnp.dot(whr_ref[...], q, preferred_element_type=f32)
                       + bh_ref[...])                           # (HID, bt)
        # TODO(synk): nn.Dropout on the hidden layer skipped (inference/eval semantics).
        logits = (jnp.dot(wl_ref[...], hid, preferred_element_type=f32)
                  + bl_ref[...])                                # (NCLS, bt)
        m = jnp.max(logits, axis=0, keepdims=True)
        e = jnp.exp(logits - m)
        probs = e / jnp.sum(e, axis=0, keepdims=True)           # exact normalization
        o_ref[0] = probs.astype(o_ref.dtype)                    # one (NCLS, bt) store

    return kernel


def _pick_bt(B):
    """bt <= 8 (VMEM headroom), prefer >=2 grid steps (v7x dual-TC sharding)."""
    best = 1
    for d in range(1, min(B, 8) + 1):
        if B % d == 0 and (B // d >= 2 or B == 1):
            best = d
    return best


def fused_cnn_pallas(x_k, kp, bt):
    """x_k: (nb, CIN1, bt*SLAB) f32 flattened conv input -> (B, NCLS) softmax."""
    nb = x_k.shape[0]
    kernel = _make_fused_kernel(bt)
    out = pl.pallas_call(
        kernel,
        out_shape=jax.ShapeDtypeStruct((nb, NCLS, bt), jnp.float32),
        grid=(nb,),
        in_specs=[
            pl.BlockSpec((1, CIN1, bt * SLAB), lambda i: (i, 0, 0)),
            pl.BlockSpec((NUM_FILTERS, K1), lambda i: (0, 0)),
            pl.BlockSpec((NUM_FILTERS, 1), lambda i: (0, 0)),
            pl.BlockSpec((NUM_FILTERS, K2), lambda i: (0, 0)),
            pl.BlockSpec((NUM_FILTERS, 1), lambda i: (0, 0)),
            pl.BlockSpec((HID, INS), lambda i: (0, 0)),
            pl.BlockSpec((HID, 1), lambda i: (0, 0)),
            pl.BlockSpec((NCLS, HID), lambda i: (0, 0)),
            pl.BlockSpec((NCLS, 1), lambda i: (0, 0)),
        ],
        out_specs=pl.BlockSpec((1, NCLS, bt), lambda i: (i, 0, 0)),
        compiler_params=pltpu.CompilerParams(
            dimension_semantics=("parallel",),          # batch tiles across TCs
            vmem_limit_bytes=32 * 1024 * 1024),         # explicit VMEM bound
    )(x_k, kp["w1k"], kp["b1k"], kp["w2k"], kp["b2k"],
      kp["whr"], kp["bhk"], kp["wlk"], kp["blk"])
    B = nb * bt
    return jnp.transpose(out, (0, 2, 1)).reshape(B, NCLS)


# ------------------------- glue (exactly matching the torch forward) -------------------------

def _pad_ids(ids):
    n = ids.shape[1]
    p1 = int((L - n) / 2)
    p2 = int(math.ceil((L - n) / 2))
    return jnp.pad(ids, ((0, 0), (max(p1, 0), max(p2, 0))), constant_values=PAD_IDX)


def build_conv_input(input_t, input_s, emb_table, bt):
    """Exact torch repeat/view pairwise features + lane-dense kernel relayout."""
    ids_t = _pad_ids(input_t)
    ids_s = _pad_ids(input_s)
    emb_t = jnp.take(emb_table, ids_t, axis=0)               # (B, L, D)
    emb_s = jnp.take(emb_table, ids_s, axis=0)               # (B, L, D)
    B, D = emb_t.shape[0], emb_table.shape[1]
    # torch's emb.repeat(L,1,1,1).view(B,L,L,D) selects batch row (b*L + l1) % B;
    # realize that selection as a cheap gather instead of materializing the repeat.
    cat_e = jnp.concatenate((emb_t, emb_s), axis=-1)         # (B, L, 2D)
    row_ids = jnp.arange(B * L, dtype=jnp.int32) % B
    x_flat = jnp.take(cat_e, row_ids, axis=0)                # (B*L, L, 2D)
    x_2d = x_flat.reshape(B, 2 * D, L, L)                    # torch .view (row-major) -> NCHW
    # kernel relayout: per-sample 32x32 slab, flattened columns col = h*RS + w,
    # batch tiles of bt samples grouped on the leading (grid) axis.
    x_pad = jnp.pad(x_2d, ((0, 0), (0, 0), (0, RS - L), (0, RS - L)))   # (B,16,32,32)
    x_cols = x_pad.reshape(B, CIN1, SLAB)                    # (B, 16, 1024)
    nb = B // bt
    x_k = (x_cols.reshape(nb, bt, CIN1, SLAB)
           .transpose(0, 2, 1, 3)
           .reshape(nb, CIN1, bt * SLAB))                    # (nb, 16, bt*1024)
    return x_k


def cnn_forward(input_t, input_s, kp):
    B = input_t.shape[0]
    bt = _pick_bt(B)
    x_k = build_conv_input(input_t, input_s, kp["emb"], bt)
    return fused_cnn_pallas(x_k, kp, bt)                     # (B, 2)


# ------------------------- pure-JAX reference (validation) -------------------------

def build_x2d(input_t, input_s, emb_table):
    ids_s = _pad_ids(input_s)
    ids_t = _pad_ids(input_t)
    emb_s = jnp.take(emb_table, ids_s, axis=0)
    emb_t = jnp.take(emb_table, ids_t, axis=0)
    B, D = emb_s.shape[0], emb_table.shape[1]
    # literal reproduction of torch .repeat(...).view(...) (row-major reinterpretation)
    t_broadcast = jnp.tile(emb_t, (L, 1, 1, 1)).reshape(B, L, L, D)
    s_broadcast = jnp.tile(emb_s, (L, 1, 1, 1)).reshape(B, L, L, D)
    x_2d = jnp.concatenate((t_broadcast, s_broadcast), axis=3)
    return x_2d.reshape(B, 2 * D, L, L)                      # torch .view -> NCHW


def reference_forward(input_t, input_s, params):
    x_2d = build_x2d(input_t, input_s, params["emb"])

    def conv_block(x, w, b):
        y = jax.lax.conv_general_dilated(
            x, w, window_strides=(1, 1), padding="VALID",
            dimension_numbers=("NCHW", "OIHW", "NCHW"),
            precision=jax.lax.Precision.HIGHEST)
        y = jnp.tanh(y + b.reshape(1, -1, 1, 1))
        return jax.lax.reduce_window(y, -jnp.inf, jax.lax.max,
                                     (1, 1, 3, 3), (1, 1, 3, 3), "VALID")

    h = conv_block(conv_block(x_2d, params["w1"], params["b1"]),
                   params["w2"], params["b2"])
    flat = h.reshape(x_2d.shape[0], -1)
    hid = jnp.tanh(jnp.dot(flat, params["wh"].T,
                           precision=jax.lax.Precision.HIGHEST) + params["bh"])
    logits = jnp.dot(hid, params["wl"].T,
                     precision=jax.lax.Precision.HIGHEST) + params["bl"]
    return jax.nn.softmax(logits, axis=1)


# ------------------------- deterministic parameter init -------------------------

def init_params(key):
    """Parameters in PyTorch layouts (Conv2d OIHW, Linear (out,in))."""
    ks = jax.random.split(key, 9)
    emb = 0.1 * jax.random.normal(ks[0], (VOCAB, WORD_VEC), jnp.float32)
    emb = emb.at[PAD_IDX].set(0.0)                           # padding_idx row = 0
    w1 = 0.1 * jax.random.normal(
        ks[1], (NUM_FILTERS, CIN1, FILTER_SIZE, FILTER_SIZE), jnp.float32)
    b1 = 0.1 * jax.random.normal(ks[2], (NUM_FILTERS,), jnp.float32)
    w2 = 0.1 * jax.random.normal(
        ks[3], (NUM_FILTERS, NUM_FILTERS, FILTER_SIZE, FILTER_SIZE), jnp.float32)
    b2 = 0.1 * jax.random.normal(ks[4], (NUM_FILTERS,), jnp.float32)
    wh = 0.1 * jax.random.normal(ks[5], (HID, INS), jnp.float32)
    bh = 0.1 * jax.random.normal(ks[6], (HID,), jnp.float32)
    wl = 0.1 * jax.random.normal(ks[7], (NCLS, HID), jnp.float32)
    bl = 0.1 * jax.random.normal(ks[8], (NCLS,), jnp.float32)
    return dict(emb=emb, w1=w1, b1=b1, w2=w2, b2=b2, wh=wh, bh=bh, wl=wl, bl=bl)


def prepare_kernel_params(params):
    """One-time relayout of the torch-layout weights for the fused kernel."""
    F = NUM_FILTERS
    # conv weights -> (Cout, (dy, dx, cin)) to match the in-kernel im2col row order
    w1k = jnp.transpose(params["w1"], (0, 2, 3, 1)).reshape(F, K1)
    w2k = jnp.transpose(params["w2"], (0, 2, 3, 1)).reshape(F, K2)
    # hid_layer weight (HID, ins) with ins index c*(HP2*HP2) + pos; reorder the
    # columns to pos*F + c so the kernel's (position, channel) q layout matches.
    whr = jnp.transpose(params["wh"].reshape(HID, F, HP2 * HP2),
                        (0, 2, 1)).reshape(HID, INS)
    return dict(
        emb=params["emb"],
        w1k=w1k, b1k=params["b1"].reshape(F, 1),
        w2k=w2k, b2k=params["b2"].reshape(F, 1),
        whr=whr, bhk=params["bh"].reshape(HID, 1),
        wlk=params["wl"], blk=params["bl"].reshape(NCLS, 1),
    )


if __name__ == "__main__":
    key = jax.random.PRNGKey(0)
    pkey, tkey, skey = jax.random.split(key, 3)
    params = init_params(pkey)
    kparams = prepare_kernel_params(params)   # one-time weight relayout

    B = 2
    # input = (input_t, input_s): two batches of token ids with different lengths
    input_t = jax.random.randint(tkey, (B, 10), 1, VOCAB, dtype=jnp.int32)
    input_s = jax.random.randint(skey, (B, 12), 1, VOCAB, dtype=jnp.int32)

    pred_prob = jax.jit(cnn_forward)(input_t, input_s, kparams)
    pred_prob = jax.block_until_ready(pred_prob)

    ref = np.asarray(reference_forward(input_t, input_s, params))
    out = np.asarray(pred_prob)

    assert out.shape == (B, NCLS)
    assert np.all(np.isfinite(out))
    # exact softmax normalization in-kernel -> rows sum to 1 up to f32 rounding
    assert np.allclose(out.sum(axis=1), 1.0, atol=1e-5)
    # small headroom for MXU f32 pass rounding vs. the HIGHEST-precision reference
    assert np.allclose(out, ref, atol=5e-3, rtol=5e-3)
    print("KERNEL_OK")
</pallas_src>

<mosaic_0001>
module attributes {stable_mosaic.version = 11 : i64} {
  func.func @kernel(%arg0: i32, %arg1: memref<1x16x1024xf32, #tpu.memory_space<vmem>>, %arg2: memref<8x144xf32, #tpu.memory_space<vmem>>, %arg3: memref<8x1xf32, #tpu.memory_space<vmem>>, %arg4: memref<8x72xf32, #tpu.memory_space<vmem>>, %arg5: memref<8x1xf32, #tpu.memory_space<vmem>>, %arg6: memref<20x32xf32, #tpu.memory_space<vmem>>, %arg7: memref<20x1xf32, #tpu.memory_space<vmem>>, %arg8: memref<2x20xf32, #tpu.memory_space<vmem>>, %arg9: memref<2x1xf32, #tpu.memory_space<vmem>>, %arg10: memref<1x2x1xf32, #tpu.memory_space<vmem>>) attributes {dimension_semantics = [#tpu.dimension_semantics<parallel>], iteration_bounds = array<i64: 2>, scalar_prefetch = 0 : i64, scratch_operands = 0 : i64, tpu.core_type = #tpu.core_type<tc>, window_params = [{transform_indices = @transform_0, window_bounds = array<i64: 1, 16, 1024>}, {pipeline_mode = #tpu.pipeline_mode<synchronous>, transform_indices = @transform_1, window_bounds = array<i64: 8, 144>}, {pipeline_mode = #tpu.pipeline_mode<synchronous>, transform_indices = @transform_2, window_bounds = array<i64: 8, 1>}, {pipeline_mode = #tpu.pipeline_mode<synchronous>, transform_indices = @transform_3, window_bounds = array<i64: 8, 72>}, {pipeline_mode = #tpu.pipeline_mode<synchronous>, transform_indices = @transform_4, window_bounds = array<i64: 8, 1>}, {pipeline_mode = #tpu.pipeline_mode<synchronous>, transform_indices = @transform_5, window_bounds = array<i64: 20, 32>}, {pipeline_mode = #tpu.pipeline_mode<synchronous>, transform_indices = @transform_6, window_bounds = array<i64: 20, 1>}, {pipeline_mode = #tpu.pipeline_mode<synchronous>, transform_indices = @transform_7, window_bounds = array<i64: 2, 20>}, {pipeline_mode = #tpu.pipeline_mode<synchronous>, transform_indices = @transform_8, window_bounds = array<i64: 2, 1>}, {transform_indices = @transform_9, window_bounds = array<i64: 1, 2, 1>}]} {
    %c0 = arith.constant 0 : index
    %c0_0 = arith.constant 0 : index
    %c0_1 = arith.constant 0 : index
    %0 = vector.load %arg1[%c0, %c0_0, %c0_1] : memref<1x16x1024xf32, #tpu.memory_space<vmem>>, vector<1x16x1024xf32>
    %1 = vector.shape_cast %0 : vector<1x16x1024xf32> to vector<16x1024xf32>
    %2 = vector.extract_strided_slice %1 {offsets = [0, 0], sizes = [16, 958], strides = [1, 1]} : vector<16x1024xf32> to vector<16x958xf32>
    %3 = vector.extract_strided_slice %1 {offsets = [0, 1], sizes = [16, 958], strides = [1, 1]} : vector<16x1024xf32> to vector<16x958xf32>
    %4 = vector.extract_strided_slice %1 {offsets = [0, 2], sizes = [16, 958], strides = [1, 1]} : vector<16x1024xf32> to vector<16x958xf32>
    %5 = vector.extract_strided_slice %1 {offsets = [0, 32], sizes = [16, 958], strides = [1, 1]} : vector<16x1024xf32> to vector<16x958xf32>
    %6 = vector.extract_strided_slice %1 {offsets = [0, 33], sizes = [16, 958], strides = [1, 1]} : vector<16x1024xf32> to vector<16x958xf32>
    %7 = vector.extract_strided_slice %1 {offsets = [0, 34], sizes = [16, 958], strides = [1, 1]} : vector<16x1024xf32> to vector<16x958xf32>
    %8 = vector.extract_strided_slice %1 {offsets = [0, 64], sizes = [16, 958], strides = [1, 1]} : vector<16x1024xf32> to vector<16x958xf32>
    %9 = vector.extract_strided_slice %1 {offsets = [0, 65], sizes = [16, 958], strides = [1, 1]} : vector<16x1024xf32> to vector<16x958xf32>
    %10 = vector.extract_strided_slice %1 {offsets = [0, 66], sizes = [16, 958], strides = [1, 1]} : vector<16x1024xf32> to vector<16x958xf32>
    %11 = tpu.concatenate %2, %3, %4, %5, %6, %7, %8, %9, %10 in 0 : vector<16x958xf32>, vector<16x958xf32>, vector<16x958xf32>, vector<16x958xf32>, vector<16x958xf32>, vector<16x958xf32>, vector<16x958xf32>, vector<16x958xf32>, vector<16x958xf32> -> vector<144x958xf32>
    %c0_2 = arith.constant 0 : index
    %c0_3 = arith.constant 0 : index
    %12 = vector.load %arg2[%c0_2, %c0_3] : memref<8x144xf32, #tpu.memory_space<vmem>>, vector<8x144xf32>
    %cst = arith.constant dense<0.000000e+00> : vector<8x958xf32>
    %13 = tpu.matmul %12, %11, %cst {dimension_numbers = #tpu.dot_dimension_numbers<[1], [0], [0], [1], [0, 0, 1, 1], [], []>} : vector<8x144xf32>, vector<144x958xf32>, vector<8x958xf32> -> vector<8x958xf32>
    %c0_4 = arith.constant 0 : index
    %c0_5 = arith.constant 0 : index
    %14 = vector.load %arg3[%c0_4, %c0_5] : memref<8x1xf32, #tpu.memory_space<vmem>>, vector<8x1xf32>
    %15 = vector.broadcast %14 : vector<8x1xf32> to vector<8x958xf32>
    %16 = arith.addf %13, %15 : vector<8x958xf32>
    %17 = math.tanh %16 : vector<8x958xf32>
    %18 = vector.extract_strided_slice %17 {offsets = [0, 0], sizes = [8, 892], strides = [1, 1]} : vector<8x958xf32> to vector<8x892xf32>
    %19 = vector.extract_strided_slice %17 {offsets = [0, 1], sizes = [8, 892], strides = [1, 1]} : vector<8x958xf32> to vector<8x892xf32>
    %20 = arith.maximumf %18, %19 : vector<8x892xf32>
    %21 = vector.extract_strided_slice %17 {offsets = [0, 2], sizes = [8, 892], strides = [1, 1]} : vector<8x958xf32> to vector<8x892xf32>
    %22 = arith.maximumf %20, %21 : vector<8x892xf32>
    %23 = vector.extract_strided_slice %17 {offsets = [0, 32], sizes = [8, 892], strides = [1, 1]} : vector<8x958xf32> to vector<8x892xf32>
    %24 = arith.maximumf %22, %23 : vector<8x892xf32>
    %25 = vector.extract_strided_slice %17 {offsets = [0, 33], sizes = [8, 892], strides = [1, 1]} : vector<8x958xf32> to vector<8x892xf32>
    %26 = arith.maximumf %24, %25 : vector<8x892xf32>
    %27 = vector.extract_strided_slice %17 {offsets = [0, 34], sizes = [8, 892], strides = [1, 1]} : vector<8x958xf32> to vector<8x892xf32>
    %28 = arith.maximumf %26, %27 : vector<8x892xf32>
    %29 = vector.extract_strided_slice %17 {offsets = [0, 64], sizes = [8, 892], strides = [1, 1]} : vector<8x958xf32> to vector<8x892xf32>
    %30 = arith.maximumf %28, %29 : vector<8x892xf32>
    %31 = vector.extract_strided_slice %17 {offsets = [0, 65], sizes = [8, 892], strides = [1, 1]} : vector<8x958xf32> to vector<8x892xf32>
    %32 = arith.maximumf %30, %31 : vector<8x892xf32>
    %33 = vector.extract_strided_slice %17 {offsets = [0, 66], sizes = [8, 892], strides = [1, 1]} : vector<8x958xf32> to vector<8x892xf32>
    %34 = arith.maximumf %32, %33 : vector<8x892xf32>
    %35 = vector.extract_strided_slice %34 {offsets = [0, 0], sizes = [8, 694], strides = [1, 1]} : vector<8x892xf32> to vector<8x694xf32>
    %36 = vector.extract_strided_slice %34 {offsets = [0, 3], sizes = [8, 694], strides = [1, 1]} : vector<8x892xf32> to vector<8x694xf32>
    %37 = vector.extract_strided_slice %34 {offsets = [0, 6], sizes = [8, 694], strides = [1, 1]} : vector<8x892xf32> to vector<8x694xf32>
    %38 = vector.extract_strided_slice %34 {offsets = [0, 96], sizes = [8, 694], strides = [1, 1]} : vector<8x892xf32> to vector<8x694xf32>
    %39 = vector.extract_strided_slice %34 {offsets = [0, 99], sizes = [8, 694], strides = [1, 1]} : vector<8x892xf32> to vector<8x694xf32>
    %40 = vector.extract_strided_slice %34 {offsets = [0, 102], sizes = [8, 694], strides = [1, 1]} : vector<8x892xf32> to vector<8x694xf32>
    %41 = vector.extract_strided_slice %34 {offsets = [0, 192], sizes = [8, 694], strides = [1, 1]} : vector<8x892xf32> to vector<8x694xf32>
    %42 = vector.extract_strided_slice %34 {offsets = [0, 195], sizes = [8, 694], strides = [1, 1]} : vector<8x892xf32> to vector<8x694xf32>
    %43 = vector.extract_strided_slice %34 {offsets = [0, 198], sizes = [8, 694], strides = [1, 1]} : vector<8x892xf32> to vector<8x694xf32>
    %44 = tpu.concatenate %35, %36, %37, %38, %39, %40, %41, %42, %43 in 0 : vector<8x694xf32>, vector<8x694xf32>, vector<8x694xf32>, vector<8x694xf32>, vector<8x694xf32>, vector<8x694xf32>, vector<8x694xf32>, vector<8x694xf32>, vector<8x694xf32> -> vector<72x694xf32>
    %c0_6 = arith.constant 0 : index
    %c0_7 = arith.constant 0 : index
    %45 = vector.load %arg4[%c0_6, %c0_7] : memref<8x72xf32, #tpu.memory_space<vmem>>, vector<8x72xf32>
    %cst_8 = arith.constant dense<0.000000e+00> : vector<8x694xf32>
    %46 = tpu.matmul %45, %44, %cst_8 {dimension_numbers = #tpu.dot_dimension_numbers<[1], [0], [0], [1], [0, 0, 1, 1], [], []>} : vector<8x72xf32>, vector<72x694xf32>, vector<8x694xf32> -> vector<8x694xf32>
    %c0_9 = arith.constant 0 : index
    %c0_10 = arith.constant 0 : index
    %47 = vector.load %arg5[%c0_9, %c0_10] : memref<8x1xf32, #tpu.memory_space<vmem>>, vector<8x1xf32>
    %48 = vector.broadcast %47 : vector<8x1xf32> to vector<8x694xf32>
    %49 = arith.addf %46, %48 : vector<8x694xf32>
    %50 = math.tanh %49 : vector<8x694xf32>
    %51 = vector.extract_strided_slice %50 {offsets = [0, 0], sizes = [8, 496], strides = [1, 1]} : vector<8x694xf32> to vector<8x496xf32>
    %52 = vector.extract_strided_slice %50 {offsets = [0, 3], sizes = [8, 496], strides = [1, 1]} : vector<8x694xf32> to vector<8x496xf32>
    %53 = arith.maximumf %51, %52 : vector<8x496xf32>
    %54 = vector.extract_strided_slice %50 {offsets = [0, 6], sizes = [8, 496], strides = [1, 1]} : vector<8x694xf32> to vector<8x496xf32>
    %55 = arith.maximumf %53, %54 : vector<8x496xf32>
    %56 = vector.extract_strided_slice %50 {offsets = [0, 96], sizes = [8, 496], strides = [1, 1]} : vector<8x694xf32> to vector<8x496xf32>
    %57 = arith.maximumf %55, %56 : vector<8x496xf32>
    %58 = vector.extract_strided_slice %50 {offsets = [0, 99], sizes = [8, 496], strides = [1, 1]} : vector<8x694xf32> to vector<8x496xf32>
    %59 = arith.maximumf %57, %58 : vector<8x496xf32>
    %60 = vector.extract_strided_slice %50 {offsets = [0, 102], sizes = [8, 496], strides = [1, 1]} : vector<8x694xf32> to vector<8x496xf32>
    %61 = arith.maximumf %59, %60 : vector<8x496xf32>
    %62 = vector.extract_strided_slice %50 {offsets = [0, 192], sizes = [8, 496], strides = [1, 1]} : vector<8x694xf32> to vector<8x496xf32>
    %63 = arith.maximumf %61, %62 : vector<8x496xf32>
    %64 = vector.extract_strided_slice %50 {offsets = [0, 195], sizes = [8, 496], strides = [1, 1]} : vector<8x694xf32> to vector<8x496xf32>
    %65 = arith.maximumf %63, %64 : vector<8x496xf32>
    %66 = vector.extract_strided_slice %50 {offsets = [0, 198], sizes = [8, 496], strides = [1, 1]} : vector<8x694xf32> to vector<8x496xf32>
    %67 = arith.maximumf %65, %66 : vector<8x496xf32>
    %68 = vector.extract_strided_slice %67 {offsets = [0, 0], sizes = [8, 1], strides = [1, 1]} : vector<8x496xf32> to vector<8x1xf32>
    %69 = vector.extract_strided_slice %67 {offsets = [0, 9], sizes = [8, 1], strides = [1, 1]} : vector<8x496xf32> to vector<8x1xf32>
    %70 = vector.extract_strided_slice %67 {offsets = [0, 288], sizes = [8, 1], strides = [1, 1]} : vector<8x496xf32> to vector<8x1xf32>
    %71 = vector.extract_strided_slice %67 {offsets = [0, 297], sizes = [8, 1], strides = [1, 1]} : vector<8x496xf32> to vector<8x1xf32>
    %72 = tpu.concatenate %68, %69, %70, %71 in 0 : vector<8x1xf32>, vector<8x1xf32>, vector<8x1xf32>, vector<8x1xf32> -> vector<32x1xf32>
    %c0_11 = arith.constant 0 : index
    %c0_12 = arith.constant 0 : index
    %73 = vector.load %arg6[%c0_11, %c0_12] : memref<20x32xf32, #tpu.memory_space<vmem>>, vector<20x32xf32>
    %cst_13 = arith.constant dense<0.000000e+00> : vector<20x1xf32>
    %74 = tpu.matmul %73, %72, %cst_13 {dimension_numbers = #tpu.dot_dimension_numbers<[1], [0], [0], [1], [0, 0, 1, 1], [], []>} : vector<20x32xf32>, vector<32x1xf32>, vector<20x1xf32> -> vector<20x1xf32>
    %c0_14 = arith.constant 0 : index
    %c0_15 = arith.constant 0 : index
    %75 = vector.load %arg7[%c0_14, %c0_15] : memref<20x1xf32, #tpu.memory_space<vmem>>, vector<20x1xf32>
    %76 = arith.addf %74, %75 : vector<20x1xf32>
    %77 = math.tanh %76 : vector<20x1xf32>
    %c0_16 = arith.constant 0 : index
    %c0_17 = arith.constant 0 : index
    %78 = vector.load %arg8[%c0_16, %c0_17] : memref<2x20xf32, #tpu.memory_space<vmem>>, vector<2x20xf32>
    %cst_18 = arith.constant dense<0.000000e+00> : vector<2x1xf32>
    %79 = tpu.matmul %78, %77, %cst_18 {dimension_numbers = #tpu.dot_dimension_numbers<[1], [0], [0], [1], [0, 0, 1, 1], [], []>} : vector<2x20xf32>, vector<20x1xf32>, vector<2x1xf32> -> vector<2x1xf32>
    %c0_19 = arith.constant 0 : index
    %c0_20 = arith.constant 0 : index
    %80 = vector.load %arg9[%c0_19, %c0_20] : memref<2x1xf32, #tpu.memory_space<vmem>>, vector<2x1xf32>
    %81 = arith.addf %79, %80 : vector<2x1xf32>
    %cst_21 = arith.constant dense<0xFF800000> : vector<1xf32>
    %82 = vector.multi_reduction <maximumf>, %81, %cst_21 [0] : vector<2x1xf32> to vector<1xf32>
    %83 = vector.shape_cast %82 : vector<1xf32> to vector<1x1xf32>
    %84 = vector.broadcast %83 : vector<1x1xf32> to vector<2x1xf32>
    %85 = arith.subf %81, %84 : vector<2x1xf32>
    %86 = math.exp %85 : vector<2x1xf32>
    %cst_22 = arith.constant dense<0.000000e+00> : vector<1xf32>
    %87 = vector.multi_reduction <add>, %86, %cst_22 [0] : vector<2x1xf32> to vector<1xf32>
    %88 = vector.shape_cast %87 : vector<1xf32> to vector<1x1xf32>
    %89 = vector.broadcast %88 : vector<1x1xf32> to vector<2x1xf32>
    %90 = arith.divf %86, %89 : vector<2x1xf32>
    %c0_23 = arith.constant 0 : index
    %c0_24 = arith.constant 0 : index
    %c0_25 = arith.constant 0 : index
    %91 = vector.load %arg10[%c0_23, %c0_24, %c0_25] : memref<1x2x1xf32, #tpu.memory_space<vmem>>, vector<1x2x1xf32>
    %92 = vector.shape_cast %91 : vector<1x2x1xf32> to vector<2x1xf32>
    %93 = vector.shape_cast %90 : vector<2x1xf32> to vector<1x2x1xf32>
    tpu.vector_store %arg10[%c0_23, %c0_24, %c0_25], %93 {strides = array<i32>} : memref<1x2x1xf32, #tpu.memory_space<vmem>>, vector<1x2x1xf32>,
    return
  }
  func.func @transform_0(%arg0: i32) -> (i32, i32, i32) {
    %c0_i32 = arith.constant 0 : i32
    %c0_i32_0 = arith.constant 0 : i32
    %c0_i32_1 = arith.constant 0 : i32
    return %arg0, %c0_i32, %c0_i32_0 : i32, i32, i32
  }
  func.func @transform_1(%arg0: i32) -> (i32, i32) {
    %c0_i32 = arith.constant 0 : i32
    %c0_i32_0 = arith.constant 0 : i32
    %c0_i32_1 = arith.constant 0 : i32
    return %c0_i32, %c0_i32_0 : i32, i32
  }
  func.func @transform_2(%arg0: i32) -> (i32, i32) {
    %c0_i32 = arith.constant 0 : i32
    %c0_i32_0 = arith.constant 0 : i32
    %c0_i32_1 = arith.constant 0 : i32
    return %c0_i32, %c0_i32_0 : i32, i32
  }
  func.func @transform_3(%arg0: i32) -> (i32, i32) {
    %c0_i32 = arith.constant 0 : i32
    %c0_i32_0 = arith.constant 0 : i32
    %c0_i32_1 = arith.constant 0 : i32
    return %c0_i32, %c0_i32_0 : i32, i32
  }
  func.func @transform_4(%arg0: i32) -> (i32, i32) {
    %c0_i32 = arith.constant 0 : i32
    %c0_i32_0 = arith.constant 0 : i32
    %c0_i32_1 = arith.constant 0 : i32
    return %c0_i32, %c0_i32_0 : i32, i32
  }
  func.func @transform_5(%arg0: i32) -> (i32, i32) {
    %c0_i32 = arith.constant 0 : i32
    %c0_i32_0 = arith.constant 0 : i32
    %c0_i32_1 = arith.constant 0 : i32
    return %c0_i32, %c0_i32_0 : i32, i32
  }
  func.func @transform_6(%arg0: i32) -> (i32, i32) {
    %c0_i32 = arith.constant 0 : i32
    %c0_i32_0 = arith.constant 0 : i32
    %c0_i32_1 = arith.constant 0 : i32
    return %c0_i32, %c0_i32_0 : i32, i32
  }
  func.func @transform_7(%arg0: i32) -> (i32, i32) {
    %c0_i32 = arith.constant 0 : i32
    %c0_i32_0 = arith.constant 0 : i32
    %c0_i32_1 = arith.constant 0 : i32
    return %c0_i32, %c0_i32_0 : i32, i32
  }
  func.func @transform_8(%arg0: i32) -> (i32, i32) {
    %c0_i32 = arith.constant 0 : i32
    %c0_i32_0 = arith.constant 0 : i32
    %c0_i32_1 = arith.constant 0 : i32
    return %c0_i32, %c0_i32_0 : i32, i32
  }
  func.func @transform_9(%arg0: i32) -> (i32, i32, i32) {
    %c0_i32 = arith.constant 0 : i32
    %c0_i32_0 = arith.constant 0 : i32
    %c0_i32_1 = arith.constant 0 : i32
    return %arg0, %c0_i32, %c0_i32_0 : i32, i32, i32
  }
}

</mosaic_0001>

<llo_original>
// kernel: cnn_forward.1
$region0: #{cnn_forward.1}
  #allocation0 [shape = 'u32[]', space=smem, size = 0x4, offset = 0x4, fixed_abs, tag = 'smem constant byte address 0x4 - core index']
  #allocation1 [shape = 'u32[144,128]{1,0:T(1,128)}', space=vmem, size = 0x12000, scoped, tag = 'internal scratch']
  %s0 = inlined_call_operand.vmem [shape: f32[2,16,1024], index: 0, kind: input, shape index: {}]
  %s1 = inlined_call_operand.vmem [shape: f32[8,144], index: 1, kind: input, shape index: {}]
  %s2 = inlined_call_operand.vmem [shape: f32[8,1], index: 2, kind: input, shape index: {}]
  %s3 = inlined_call_operand.vmem [shape: f32[8,72], index: 3, kind: input, shape index: {}]
  %s4 = inlined_call_operand.vmem [shape: f32[8,1], index: 4, kind: input, shape index: {}]
  %s5 = inlined_call_operand.vmem [shape: f32[20,32], index: 5, kind: input, shape index: {}]
  %s6 = inlined_call_operand.vmem [shape: f32[20,1], index: 6, kind: input, shape index: {}]
  %s7 = inlined_call_operand.vmem [shape: f32[2,20], index: 7, kind: input, shape index: {}]
  %s8 = inlined_call_operand.vmem [shape: f32[2,1], index: 8, kind: input, shape index: {}]
  %s9 = inlined_call_operand.vmem [shape: f32[2,2,1], index: 9, kind: output, shape index: {}]
  %s10 = sld [smem:[#allocation0]]
  $region69: #{cnn_forward.1} parent=0
    _
  %s12 = ssub.s32 1, %s10
  %s13 = scalar_select 0, %s12, %s10
  loop: start=0, step=1, limit=4
  $region2: #{cnn_forward.1} parent=0 // loop_pre_header
    _
  $region3: #{cnn_forward.1} parent=0 // loop_header
    %s15 = sphi 0, %s19
    %p16 = scmp.ge.s32.totalorder %s15, 4
    %s25 = sphi 0, %s27
    %s28 = sphi 0, %s25
    %s29 = sphi 0, %s28
    %s45 = sphi 0, %s29
    %s49 = sphi 0, %s49
    %s51 = sphi 0, %s49
    %s52 = sphi 0, %s51
    %s66 = sphi 0, %s52
    %s70 = sphi 0, %s70
    %s72 = sphi 0, %s70
    %s73 = sphi 0, %s72
    %s87 = sphi 0, %s73
    %s91 = sphi 0, %s91
    %s93 = sphi 0, %s91
    %s94 = sphi 0, %s93
    %s108 = sphi 0, %s94
    %s112 = sphi 0, %s112
    %s114 = sphi 0, %s112
    %s115 = sphi 0, %s114
    %s129 = sphi 0, %s115
    %s133 = sphi 0, %s133
    %s135 = sphi 0, %s133
    %s136 = sphi 0, %s135
    %s150 = sphi 0, %s136
    %s154 = sphi 0, %s154
    %s156 = sphi 0, %s154
    %s157 = sphi 0, %s156
    %s171 = sphi 0, %s157
    %s175 = sphi 0, %s175
    %s177 = sphi 0, %s175
    %s178 = sphi 0, %s177
    %s192 = sphi 0, %s178
    %s196 = sphi 0, %s196
    %s198 = sphi 0, %s196
    %s199 = sphi 0, %s198
    %s213 = sphi 0, %s199
    %s219 = sphi 0, %s221
    %s222 = sphi 0, %s219
    %s223 = sphi 0, %s222
    %s239 = sphi 0, %s223
  $region4: #{cnn_forward.1} parent=0 // loop_header_branch
    %18 = sbr.rel (%p16) target = $region8
  $region5: #{cnn_forward.1} parent=0 // loop_body
    %s20 = ssub.s32 %s15, 1
    %s21 = ssub.s32 %s15, 2
    %s22 = sadd.s32 %s15, 1
    %s23 = ssub.s32 %s15, %s22
    %p24 = scmp.eq.s32.totalorder %s23, 0
    %s26 = sadd.s32 %s25, 1
    %s27 = scalar_select %p24, %s25, %s26
    %p30 = pneg %p24
    %p31 = scmp.eq.s32.totalorder %s15, 1
    %p32 = por %p30, %p31
    %p33 = scmp.ne.s32.totalorder %s25, %s28
    %p34 = scmp.eq.s32.totalorder %s15, 0
    %p35 = por %p33, %p34
    %p36 = scmp.ne.s32.totalorder %s25, %s28
    %p37 = scmp.eq.s32.totalorder %s20, 1
    %p38 = por %p36, %p37
    %p39 = scmp.ne.s32.totalorder %s28, %s29
    %p40 = scmp.eq.s32.totalorder %s20, 0
    %p41 = por %p39, %p40
    %p42 = scmp.ne.s32.totalorder %s28, %s29
    %p43 = scmp.eq.s32.totalorder %s21, 1
    %p44 = por %p42, %p43
    %p46 = scmp.ne.s32.totalorder %s29, %s45
    %p47 = scmp.eq.s32.totalorder %s21, 0
    %p48 = por %p46, %p47
    %s50 = sadd.s32 %s49, 1
    %p53 = scmp.eq.s32.totalorder %s15, 1
    %p54 = scmp.ne.s32.totalorder %s49, %s51
    %p55 = scmp.eq.s32.totalorder %s15, 0
    %p56 = por %p54, %p55
    %p57 = scmp.ne.s32.totalorder %s49, %s51
    %p58 = scmp.eq.s32.totalorder %s20, 1
    %p59 = por %p57, %p58
    %p60 = scmp.ne.s32.totalorder %s51, %s52
    %p61 = scmp.eq.s32.totalorder %s20, 0
    %p62 = por %p60, %p61
    %p63 = scmp.ne.s32.totalorder %s51, %s52
    %p64 = scmp.eq.s32.totalorder %s21, 1
    %p65 = por %p63, %p64
    %p67 = scmp.ne.s32.totalorder %s52, %s66
    %p68 = scmp.eq.s32.totalorder %s21, 0
    %p69 = por %p67, %p68
    %s71 = sadd.s32 %s70, 1
    %p74 = scmp.eq.s32.totalorder %s15, 1
    %p75 = scmp.ne.s32.totalorder %s70, %s72
    %p76 = scmp.eq.s32.totalorder %s15, 0
    %p77 = por %p75, %p76
    %p78 = scmp.ne.s32.totalorder %s70, %s72
    %p79 = scmp.eq.s32.totalorder %s20, 1
    %p80 = por %p78, %p79
    %p81 = scmp.ne.s32.totalorder %s72, %s73
    %p82 = scmp.eq.s32.totalorder %s20, 0
    %p83 = por %p81, %p82
    %p84 = scmp.ne.s32.totalorder %s72, %s73
    %p85 = scmp.eq.s32.totalorder %s21, 1
    %p86 = por %p84, %p85
    %p88 = scmp.ne.s32.totalorder %s73, %s87
    %p89 = scmp.eq.s32.totalorder %s21, 0
    %p90 = por %p88, %p89
    %s92 = sadd.s32 %s91, 1
    %p95 = scmp.eq.s32.totalorder %s15, 1
    %p96 = scmp.ne.s32.totalorder %s91, %s93
    %p97 = scmp.eq.s32.totalorder %s15, 0
    %p98 = por %p96, %p97
    %p99 = scmp.ne.s32.totalorder %s91, %s93
    %p100 = scmp.eq.s32.totalorder %s20, 1
    %p101 = por %p99, %p100
    %p102 = scmp.ne.s32.totalorder %s93, %s94
    %p103 = scmp.eq.s32.totalorder %s20, 0
    %p104 = por %p102, %p103
    %p105 = scmp.ne.s32.totalorder %s93, %s94
    %p106 = scmp.eq.s32.totalorder %s21, 1
    %p107 = por %p105, %p106
    %p109 = scmp.ne.s32.totalorder %s94, %s108
    %p110 = scmp.eq.s32.totalorder %s21, 0
    %p111 = por %p109, %p110
    %s113 = sadd.s32 %s112, 1
    %p116 = scmp.eq.s32.totalorder %s15, 1
    %p117 = scmp.ne.s32.totalorder %s112, %s114
    %p118 = scmp.eq.s32.totalorder %s15, 0
    %p119 = por %p117, %p118
    %p120 = scmp.ne.s32.totalorder %s112, %s114
    %p121 = scmp.eq.s32.totalorder %s20, 1
    %p122 = por %p120, %p121
    %p123 = scmp.ne.s32.totalorder %s114, %s115
    %p124 = scmp.eq.s32.totalorder %s20, 0
    %p125 = por %p123, %p124
    %p126 = scmp.ne.s32.totalorder %s114, %s115
    %p127 = scmp.eq.s32.totalorder %s21, 1
    %p128 = por %p126, %p127
    %p130 = scmp.ne.s32.totalorder %s115, %s129
    %p131 = scmp.eq.s32.totalorder %s21, 0
    %p132 = por %p130, %p131
    %s134 = sadd.s32 %s133, 1
    %p137 = scmp.eq.s32.totalorder %s15, 1
    %p138 = scmp.ne.s32.totalorder %s133, %s135
    %p139 = scmp.eq.s32.totalorder %s15, 0
    %p140 = por %p138, %p139
    %p141 = scmp.ne.s32.totalorder %s133, %s135
    %p142 = scmp.eq.s32.totalorder %s20, 1
    %p143 = por %p141, %p142
    %p144 = scmp.ne.s32.totalorder %s135, %s136
    %p145 = scmp.eq.s32.totalorder %s20, 0
    %p146 = por %p144, %p145
    %p147 = scmp.ne.s32.totalorder %s135, %s136
    %p148 = scmp.eq.s32.totalorder %s21, 1
    %p149 = por %p147, %p148
    %p151 = scmp.ne.s32.totalorder %s136, %s150
    %p152 = scmp.eq.s32.totalorder %s21, 0
    %p153 = por %p151, %p152
    %s155 = sadd.s32 %s154, 1
    %p158 = scmp.eq.s32.totalorder %s15, 1
    %p159 = scmp.ne.s32.totalorder %s154, %s156
    %p160 = scmp.eq.s32.totalorder %s15, 0
    %p161 = por %p159, %p160
    %p162 = scmp.ne.s32.totalorder %s154, %s156
    %p163 = scmp.eq.s32.totalorder %s20, 1
    %p164 = por %p162, %p163
    %p165 = scmp.ne.s32.totalorder %s156, %s157
    %p166 = scmp.eq.s32.totalorder %s20, 0
    %p167 = por %p165, %p166
    %p168 = scmp.ne.s32.totalorder %s156, %s157
    %p169 = scmp.eq.s32.totalorder %s21, 1
    %p170 = por %p168, %p169
    %p172 = scmp.ne.s32.totalorder %s157, %s171
    %p173 = scmp.eq.s32.totalorder %s21, 0
    %p174 = por %p172, %p173
    %s176 = sadd.s32 %s175, 1
    %p179 = scmp.eq.s32.totalorder %s15, 1
    %p180 = scmp.ne.s32.totalorder %s175, %s177
    %p181 = scmp.eq.s32.totalorder %s15, 0
    %p182 = por %p180, %p181
    %p183 = scmp.ne.s32.totalorder %s175, %s177
    %p184 = scmp.eq.s32.totalorder %s20, 1
    %p185 = por %p183, %p184
    %p186 = scmp.ne.s32.totalorder %s177, %s178
    %p187 = scmp.eq.s32.totalorder %s20, 0
    %p188 = por %p186, %p187
    %p189 = scmp.ne.s32.totalorder %s177, %s178
    %p190 = scmp.eq.s32.totalorder %s21, 1
    %p191 = por %p189, %p190
    %p193 = scmp.ne.s32.totalorder %s178, %s192
    %p194 = scmp.eq.s32.totalorder %s21, 0
    %p195 = por %p193, %p194
    %s197 = sadd.s32 %s196, 1
    %p200 = scmp.eq.s32.totalorder %s15, 1
    %p201 = scmp.ne.s32.totalorder %s196, %s198
    %p202 = scmp.eq.s32.totalorder %s15, 0
    %p203 = por %p201, %p202
    %p204 = scmp.ne.s32.totalorder %s196, %s198
    %p205 = scmp.eq.s32.totalorder %s20, 1
    %p206 = por %p204, %p205
    %p207 = scmp.ne.s32.totalorder %s198, %s199
    %p208 = scmp.eq.s32.totalorder %s20, 0
    %p209 = por %p207, %p208
    %p210 = scmp.ne.s32.totalorder %s198, %s199
    %p211 = scmp.eq.s32.totalorder %s21, 1
    %p212 = por %p210, %p211
    %p214 = scmp.ne.s32.totalorder %s199, %s213
    %p215 = scmp.eq.s32.totalorder %s21, 0
    %p216 = por %p214, %p215
    %s217 = ssub.s32 %s15, %s22
    %p218 = scmp.eq.s32.totalorder %s217, 0
    %s220 = sadd.s32 %s219, 1
    %s221 = scalar_select %p218, %s219, %s220
    %p224 = pneg %p218
    %p225 = scmp.eq.s32.totalorder %s15, 1
    %p226 = por %p224, %p225
    %p227 = scmp.ne.s32.totalorder %s219, %s222
    %p228 = scmp.eq.s32.totalorder %s15, 0
    %p229 = por %p227, %p228
    %p230 = scmp.ne.s32.totalorder %s219, %s222
    %p231 = scmp.eq.s32.totalorder %s20, 1
    %p232 = por %p230, %p231
    %p233 = scmp.ne.s32.totalorder %s222, %s223
    %p234 = scmp.eq.s32.totalorder %s20, 0
    %p235 = por %p233, %p234
    %p236 = scmp.ne.s32.totalorder %s222, %s223
    %p237 = scmp.eq.s32.totalorder %s21, 1
    %p238 = por %p236, %p237
    %p240 = scmp.ne.s32.totalorder %s223, %s239
    %p241 = scmp.eq.s32.totalorder %s21, 0
    %p242 = por %p240, %p241
    %p243 = scmp.le.s32.totalorder 1, %s15
    %p244 = scmp.lt.s32.totalorder %s15, 3
    %p245 = pnand %p243, %p244
    %p246 = pneg %p245
    // Predicated region
    $region9: #{cnn_forward.1} parent=5 // pred_check
      _
    $region10: #{cnn_forward.1} parent=5 // pred_check_branch
      %248 = sbr.rel (%p245) target = $region12
    $region11: #{cnn_forward.1} parent=5 // pred_region
      %s249 = ssub.s32 %s15, 1
      // Predicated region
      $region13: #{cnn_forward.1} parent=11 // pred_check
        %p250 = pneg %p62
      $region14: #{cnn_forward.1} parent=11 // pred_check_branch
        %252 = sbr.rel (%p250) target = $region16
      $region15: #{cnn_forward.1} parent=11 // pred_region
        _
      $region16: #{cnn_forward.1} parent=11 // pred_fallthru
        _
      // Predicated region
      $region17: #{cnn_forward.1} parent=11 // pred_check
        %p253 = pneg %p83
      $region18: #{cnn_forward.1} parent=11 // pred_check_branch
        %255 = sbr.rel (%p253) target = $region20
      $region19: #{cnn_forward.1} parent=11 // pred_region
        _
      $region20: #{cnn_forward.1} parent=11 // pred_fallthru
        _
      // Predicated region
      $region21: #{cnn_forward.1} parent=11 // pred_check
        %p256 = pneg %p104
      $region22: #{cnn_forward.1} parent=11 // pred_check_branch
        %258 = sbr.rel (%p256) target = $region24
      $region23: #{cnn_forward.1} parent=11 // pred_region
        _
      $region24: #{cnn_forward.1} parent=11 // pred_fallthru
        _
      // Predicated region
      $region25: #{cnn_forward.1} parent=11 // pred_check
        %p259 = pneg %p125
      $region26: #{cnn_forward.1} parent=11 // pred_check_branch
        %261 = sbr.rel (%p259) target = $region28
      $region27: #{cnn_forward.1} parent=11 // pred_region
        _
      $region28: #{cnn_forward.1} parent=11 // pred_fallthru
        _
      // Predicated region
      $region29: #{cnn_forward.1} parent=11 // pred_check
        %p262 = pneg %p146
      $region30: #{cnn_forward.1} parent=11 // pred_check_branch
        %264 = sbr.rel (%p262) target = $region32
      $region31: #{cnn_forward.1} parent=11 // pred_region
        _
      $region32: #{cnn_forward.1} parent=11 // pred_fallthru
        _
      // Predicated region
      $region33: #{cnn_forward.1} parent=11 // pred_check
        %p265 = pneg %p167
      $region34: #{cnn_forward.1} parent=11 // pred_check_branch
        %267 = sbr.rel (%p265) target = $region36
      $region35: #{cnn_forward.1} parent=11 // pred_region
        _
      $region36: #{cnn_forward.1} parent=11 // pred_fallthru
        _
      // Predicated region
      $region37: #{cnn_forward.1} parent=11 // pred_check
        %p268 = pneg %p188
      $region38: #{cnn_forward.1} parent=11 // pred_check_branch
        %270 = sbr.rel (%p268) target = $region40
      $region39: #{cnn_forward.1} parent=11 // pred_region
        _
      $region40: #{cnn_forward.1} parent=11 // pred_fallthru
        _
      // Predicated region
      $region41: #{cnn_forward.1} parent=11 // pred_check
        %p271 = pneg %p209
      $region42: #{cnn_forward.1} parent=11 // pred_check_branch
        %273 = sbr.rel (%p271) target = $region44
      $region43: #{cnn_forward.1} parent=11 // pred_region
        _
      $region44: #{cnn_forward.1} parent=11 // pred_fallthru
        _
    $region12: #{cnn_forward.1} parent=5 // pred_fallthru
      _
    %p274 = scmp.lt.s32.totalorder %s15, 2
    // Predicated region
    $region45: #{cnn_forward.1} parent=5 // pred_check
      %p275 = pneg %p274
    $region46: #{cnn_forward.1} parent=5 // pred_check_branch
      %277 = sbr.rel (%p275) target = $region48
    $region47: #{cnn_forward.1} parent=5 // pred_region
      // Predicated region
      $region49: #{cnn_forward.1} parent=47 // pred_check
        %p278 = pneg %p35
      $region50: #{cnn_forward.1} parent=47 // pred_check_branch
        %280 = sbr.rel (%p278) target = $region52
      $region51: #{cnn_forward.1} parent=47 // pred_region
        %p281 = scmp.lt.s32.totalorder %s15, 1
        %s282 = scalar_select %p281, %s15, 1
        %s283 = smul.addr %s282, 16
        %s284 = smul.addr %s283, 8
        %s285 = scalar_lea.vmem %s0, %s284
      $region52: #{cnn_forward.1} parent=47 // pred_fallthru
        _
    $region48: #{cnn_forward.1} parent=5 // pred_fallthru
      _
    %p286 = scmp.le.s32.totalorder 1, %s15
    %p287 = scmp.lt.s32.totalorder %s15, 3
    %p288 = pnand %p286, %p287
    %p289 = pneg %p288
    // Predicated region
    $region53: #{cnn_forward.1} parent=5 // pred_check
      _
    $region54: #{cnn_forward.1} parent=5 // pred_check_branch
      %291 = sbr.rel (%p288) target = $region56
    $region55: #{cnn_forward.1} parent=5 // pred_region
      %s292 = ssub.s32 %s15, 1
      %p293 = scmp.lt.s32.totalorder %s20, 1
      %s294 = scalar_select %p293, %s20, 1
      %s295 = smul.addr %s294, 16
      %s296 = smul.addr %s295, 8
      %s297 = scalar_lea.vmem %s0, %s296
      %p298 = pneg %p41
      %p299 = pneg %p38
      %p300 = pneg %p62
      %p301 = pneg %p59
      %p302 = pneg %p83
      %p303 = pneg %p80
      %p304 = pneg %p104
      %p305 = pneg %p101
      %p306 = pneg %p125
      %p307 = pneg %p122
      %p308 = pneg %p146
      %p309 = pneg %p143
      %p310 = pneg %p167
      %p311 = pneg %p164
      %p312 = pneg %p188
      %p313 = pneg %p185
      %p314 = pneg %p209
      %p315 = pneg %p206
      %p316 = pneg %p235
      %p317 = pneg %p232
      %p318 = scmp.lt.s32.totalorder %s20, 1
      %s319 = scalar_select %p318, %s20, 1
      %s320 = smul.addr %s319, 2
      %s321 = scalar_lea.vmem %s9, %s320
      %p322 = scmp.lt.s32.totalorder %s20, 1
      %s323 = scalar_select %p322, %s20, 1
      %s324 = smul.addr %s323, 16
      %s325 = smul.addr %s324, 8
      %s326 = scalar_lea.vmem %s0, %s325
      %p327 = scmp.lt.s32.totalorder %s20, 1
      %s328 = scalar_select %p327, %s20, 1
      %s329 = smul.addr %s328, 2
      %s330 = scalar_lea.vmem %s9, %s329
      %v331 = vld [vmem:[%s326] sm:$0xff]
      %v332 = vld [vmem:[%s326 + $0x8] sm:$0xff]
      %v333 = vld [vmem:[%s326 + $0x10] sm:$0xff]
      %v334 = vld [vmem:[%s326 + $0x18] sm:$0xff]
      %v335 = vld [vmem:[%s326 + $0x20] sm:$0xff]
      %v336 = vld [vmem:[%s326 + $0x28] sm:$0xff]
      %v337 = vld [vmem:[%s326 + $0x30] sm:$0xff]
      %v338 = vld [vmem:[%s326 + $0x38] sm:$0xff]
      %v339 = vld [vmem:[%s326 + $0x40] sm:$0xff]
      %v340 = vld [vmem:[%s326 + $0x48] sm:$0xff]
      %v341 = vld [vmem:[%s326 + $0x50] sm:$0xff]
      %v342 = vld [vmem:[%s326 + $0x58] sm:$0xff]
      %v343 = vld [vmem:[%s326 + $0x60] sm:$0xff]
      %v344 = vld [vmem:[%s326 + $0x68] sm:$0xff]
      %v345 = vld [vmem:[%s326 + $0x70] sm:$0xff]
      %v346 = vld [vmem:[%s326 + $0x78] sm:$0xff]
      %363 = vrot.lane.b32.xlu0 %v331, 127
      %v364 = vpop.permute.xlu0 %363
      %365 = vrot.lane.b32.xlu0 %v332, 127
      %v366 = vpop.permute.xlu0 %365
      %367 = vrot.lane.b32.xlu0 %v333, 127
      %v368 = vpop.permute.xlu0 %367
      %369 = vrot.lane.b32.xlu0 %v334, 127
      %v370 = vpop.permute.xlu0 %369
      %371 = vrot.lane.b32.xlu0 %v335, 127
      %v372 = vpop.permute.xlu0 %371
      %373 = vrot.lane.b32.xlu0 %v336, 127
      %v374 = vpop.permute.xlu0 %373
      %375 = vrot.lane.b32.xlu0 %v337, 127
      %v376 = vpop.permute.xlu0 %375
      %377 = vrot.lane.b32.xlu0 %v338, 127
      %v378 = vpop.permute.xlu0 %377
      %379 = vrot.lane.b32.xlu0 %v339, 127
      %v380 = vpop.permute.xlu0 %379
      %381 = vrot.lane.b32.xlu0 %v340, 127
      %v382 = vpop.permute.xlu0 %381
      %383 = vrot.lane.b32.xlu0 %v341, 127
      %v384 = vpop.permute.xlu0 %383
      %385 = vrot.lane.b32.xlu0 %v342, 127
      %v386 = vpop.permute.xlu0 %385
      %387 = vrot.lane.b32.xlu0 %v343, 127
      %v388 = vpop.permute.xlu0 %387
      %389 = vrot.lane.b32.xlu0 %v344, 127
      %v390 = vpop.permute.xlu0 %389
      %391 = vrot.lane.b32.xlu0 %v345, 127
      %v392 = vpop.permute.xlu0 %391
      %393 = vrot.lane.b32.xlu0 %v346, 127
      %v394 = vpop.permute.xlu0 %393
      %vm395 = vcmask 1039360
      %v396 = vsel %vm395, %v364, %v366
      %v397 = vsel %vm395, %v366, %v368
      %v398 = vsel %vm395, %v368, %v370
      %v399 = vsel %vm395, %v370, %v372
      %v400 = vsel %vm395, %v372, %v374
      %v401 = vsel %vm395, %v374, %v376
      %v402 = vsel %vm395, %v376, %v378
      %v403 = vsel %vm395, %v380, %v382
      %v404 = vsel %vm395, %v382, %v384
      %v405 = vsel %vm395, %v384, %v386
      %v406 = vsel %vm395, %v386, %v388
      %v407 = vsel %vm395, %v388, %v390
      %v408 = vsel %vm395, %v390, %v392
      %v409 = vsel %vm395, %v392, %v394
      %426 = vrot.lane.b32.xlu0 %v331, 126
      %v427 = vpop.permute.xlu0 %426
      %428 = vrot.lane.b32.xlu0 %v332, 126
      %v429 = vpop.permute.xlu0 %428
      %430 = vrot.lane.b32.xlu0 %v333, 126
      %v431 = vpop.permute.xlu0 %430
      %432 = vrot.lane.b32.xlu0 %v334, 126
      %v433 = vpop.permute.xlu0 %432
      %434 = vrot.lane.b32.xlu0 %v335, 126
      %v435 = vpop.permute.xlu0 %434
      %436 = vrot.lane.b32.xlu0 %v336, 126
      %v437 = vpop.permute.xlu0 %436
      %438 = vrot.lane.b32.xlu0 %v337, 126
      %v439 = vpop.permute.xlu0 %438
      %440 = vrot.lane.b32.xlu0 %v338, 126
      %v441 = vpop.permute.xlu0 %440
      %442 = vrot.lane.b32.xlu0 %v339, 126
      %v443 = vpop.permute.xlu0 %442
      %444 = vrot.lane.b32.xlu0 %v340, 126
      %v445 = vpop.permute.xlu0 %444
      %446 = vrot.lane.b32.xlu0 %v341, 126
      %v447 = vpop.permute.xlu0 %446
      %448 = vrot.lane.b32.xlu0 %v342, 126
      %v449 = vpop.permute.xlu0 %448
      %450 = vrot.lane.b32.xlu0 %v343, 126
      %v451 = vpop.permute.xlu0 %450
      %452 = vrot.lane.b32.xlu0 %v344, 126
      %v453 = vpop.permute.xlu0 %452
      %454 = vrot.lane.b32.xlu0 %v345, 126
      %v455 = vpop.permute.xlu0 %454
      %456 = vrot.lane.b32.xlu0 %v346, 126
      %v457 = vpop.permute.xlu0 %456
      %vm458 = vcmask 1031168
      %v459 = vsel %vm458, %v427, %v429
      %v460 = vsel %vm458, %v429, %v431
      %v461 = vsel %vm458, %v431, %v433
      %v462 = vsel %vm458, %v433, %v435
      %v463 = vsel %vm458, %v435, %v437
      %v464 = vsel %vm458, %v437, %v439
      %v465 = vsel %vm458, %v439, %v441
      %v466 = vsel %vm458, %v443, %v445
      %v467 = vsel %vm458, %v445, %v447
      %v468 = vsel %vm458, %v447, %v449
      %v469 = vsel %vm458, %v449, %v451
      %v470 = vsel %vm458, %v451, %v453
      %v471 = vsel %vm458, %v453, %v455
      %v472 = vsel %vm458, %v455, %v457
      %489 = vrot.lane.b32.xlu0 %v331, 96
      %v490 = vpop.permute.xlu0 %489
      %491 = vrot.lane.b32.xlu0 %v332, 96
      %v492 = vpop.permute.xlu0 %491
      %493 = vrot.lane.b32.xlu0 %v333, 96
      %v494 = vpop.permute.xlu0 %493
      %495 = vrot.lane.b32.xlu0 %v334, 96
      %v496 = vpop.permute.xlu0 %495
      %497 = vrot.lane.b32.xlu0 %v335, 96
      %v498 = vpop.permute.xlu0 %497
      %499 = vrot.lane.b32.xlu0 %v336, 96
      %v500 = vpop.permute.xlu0 %499
      %501 = vrot.lane.b32.xlu0 %v337, 96
      %v502 = vpop.permute.xlu0 %501
      %503 = vrot.lane.b32.xlu0 %v338, 96
      %v504 = vpop.permute.xlu0 %503
      %505 = vrot.lane.b32.xlu0 %v339, 96
      %v506 = vpop.permute.xlu0 %505
      %507 = vrot.lane.b32.xlu0 %v340, 96
      %v508 = vpop.permute.xlu0 %507
      %509 = vrot.lane.b32.xlu0 %v341, 96
      %v510 = vpop.permute.xlu0 %509
      %511 = vrot.lane.b32.xlu0 %v342, 96
      %v512 = vpop.permute.xlu0 %511
      %513 = vrot.lane.b32.xlu0 %v343, 96
      %v514 = vpop.permute.xlu0 %513
      %515 = vrot.lane.b32.xlu0 %v344, 96
      %v516 = vpop.permute.xlu0 %515
      %517 = vrot.lane.b32.xlu0 %v345, 96
      %v518 = vpop.permute.xlu0 %517
      %519 = vrot.lane.b32.xlu0 %v346, 96
      %v520 = vpop.permute.xlu0 %519
      %vm521 = vcmask 785408
      %v522 = vsel %vm521, %v490, %v492
      %v523 = vsel %vm521, %v492, %v494
      %v524 = vsel %vm521, %v494, %v496
      %v525 = vsel %vm521, %v496, %v498
      %v526 = vsel %vm521, %v498, %v500
      %v527 = vsel %vm521, %v500, %v502
      %v528 = vsel %vm521, %v502, %v504
      %v529 = vsel %vm521, %v506, %v508
      %v530 = vsel %vm521, %v508, %v510
      %v531 = vsel %vm521, %v510, %v512
      %v532 = vsel %vm521, %v512, %v514
      %v533 = vsel %vm521, %v514, %v516
      %v534 = vsel %vm521, %v516, %v518
      %v535 = vsel %vm521, %v518, %v520
      %552 = vrot.lane.b32.xlu0 %v331, 95
      %v553 = vpop.permute.xlu0 %552
      %554 = vrot.lane.b32.xlu0 %v332, 95
      %v555 = vpop.permute.xlu0 %554
      %556 = vrot.lane.b32.xlu0 %v333, 95
      %v557 = vpop.permute.xlu0 %556
      %558 = vrot.lane.b32.xlu0 %v334, 95
      %v559 = vpop.permute.xlu0 %558
      %560 = vrot.lane.b32.xlu0 %v335, 95
      %v561 = vpop.permute.xlu0 %560
      %562 = vrot.lane.b32.xlu0 %v336, 95
      %v563 = vpop.permute.xlu0 %562
      %564 = vrot.lane.b32.xlu0 %v337, 95
      %v565 = vpop.permute.xlu0 %564
      %566 = vrot.lane.b32.xlu0 %v338, 95
      %v567 = vpop.permute.xlu0 %566
      %568 = vrot.lane.b32.xlu0 %v339, 95
      %v569 = vpop.permute.xlu0 %568
      %570 = vrot.lane.b32.xlu0 %v340, 95
      %v571 = vpop.permute.xlu0 %570
      %572 = vrot.lane.b32.xlu0 %v341, 95
      %v573 = vpop.permute.xlu0 %572
      %574 = vrot.lane.b32.xlu0 %v342, 95
      %v575 = vpop.permute.xlu0 %574
      %576 = vrot.lane.b32.xlu0 %v343, 95
      %v577 = vpop.permute.xlu0 %576
      %578 = vrot.lane.b32.xlu0 %v344, 95
      %v579 = vpop.permute.xlu0 %578
      %580 = vrot.lane.b32.xlu0 %v345, 95
      %v581 = vpop.permute.xlu0 %580
      %582 = vrot.lane.b32.xlu0 %v346, 95
      %v583 = vpop.permute.xlu0 %582
      %vm584 = vcmask 777216
      %v585 = vsel %vm584, %v553, %v555
      %v586 = vsel %vm584, %v555, %v557
      %v587 = vsel %vm584, %v557, %v559
      %v588 = vsel %vm584, %v559, %v561
      %v589 = vsel %vm584, %v561, %v563
      %v590 = vsel %vm584, %v563, %v565
      %v591 = vsel %vm584, %v565, %v567
      %v592 = vsel %vm584, %v569, %v571
      %v593 = vsel %vm584, %v571, %v573
      %v594 = vsel %vm584, %v573, %v575
      %v595 = vsel %vm584, %v575, %v577
      %v596 = vsel %vm584, %v577, %v579
      %v597 = vsel %vm584, %v579, %v581
      %v598 = vsel %vm584, %v581, %v583
      %615 = vrot.lane.b32.xlu0 %v331, 94
      %v616 = vpop.permute.xlu0 %615
      %617 = vrot.lane.b32.xlu0 %v332, 94
      %v618 = vpop.permute.xlu0 %617
      %619 = vrot.lane.b32.xlu0 %v333, 94
      %v620 = vpop.permute.xlu0 %619
      %621 = vrot.lane.b32.xlu0 %v334, 94
      %v622 = vpop.permute.xlu0 %621
      %623 = vrot.lane.b32.xlu0 %v335, 94
      %v624 = vpop.permute.xlu0 %623
      %625 = vrot.lane.b32.xlu0 %v336, 94
      %v626 = vpop.permute.xlu0 %625
      %627 = vrot.lane.b32.xlu0 %v337, 94
      %v628 = vpop.permute.xlu0 %627
      %629 = vrot.lane.b32.xlu0 %v338, 94
      %v630 = vpop.permute.xlu0 %629
      %631 = vrot.lane.b32.xlu0 %v339, 94
      %v632 = vpop.permute.xlu0 %631
      %633 = vrot.lane.b32.xlu0 %v340, 94
      %v634 = vpop.permute.xlu0 %633
      %635 = vrot.lane.b32.xlu0 %v341, 94
      %v636 = vpop.permute.xlu0 %635
      %637 = vrot.lane.b32.xlu0 %v342, 94
      %v638 = vpop.permute.xlu0 %637
      %639 = vrot.lane.b32.xlu0 %v343, 94
      %v640 = vpop.permute.xlu0 %639
      %641 = vrot.lane.b32.xlu0 %v344, 94
      %v642 = vpop.permute.xlu0 %641
      %643 = vrot.lane.b32.xlu0 %v345, 94
      %v644 = vpop.permute.xlu0 %643
      %645 = vrot.lane.b32.xlu0 %v346, 94
      %v646 = vpop.permute.xlu0 %645
      %vm647 = vcmask 769024
      %v648 = vsel %vm647, %v616, %v618
      %v649 = vsel %vm647, %v618, %v620
      %v650 = vsel %vm647, %v620, %v622
      %v651 = vsel %vm647, %v622, %v624
      %v652 = vsel %vm647, %v624, %v626
      %v653 = vsel %vm647, %v626, %v628
      %v654 = vsel %vm647, %v628, %v630
      %v655 = vsel %vm647, %v632, %v634
      %v656 = vsel %vm647, %v634, %v636
      %v657 = vsel %vm647, %v636, %v638
      %v658 = vsel %vm647, %v638, %v640
      %v659 = vsel %vm647, %v640, %v642
      %v660 = vsel %vm647, %v642, %v644
      %v661 = vsel %vm647, %v644, %v646
      %678 = vrot.lane.b32.xlu0 %v331, 64
      %v679 = vpop.permute.xlu0 %678
      %680 = vrot.lane.b32.xlu0 %v332, 64
      %v681 = vpop.permute.xlu0 %680
      %682 = vrot.lane.b32.xlu0 %v333, 64
      %v683 = vpop.permute.xlu0 %682
      %684 = vrot.lane.b32.xlu0 %v334, 64
      %v685 = vpop.permute.xlu0 %684
      %686 = vrot.lane.b32.xlu0 %v335, 64
      %v687 = vpop.permute.xlu0 %686
      %688 = vrot.lane.b32.xlu0 %v336, 64
      %v689 = vpop.permute.xlu0 %688
      %690 = vrot.lane.b32.xlu0 %v337, 64
      %v691 = vpop.permute.xlu0 %690
      %692 = vrot.lane.b32.xlu0 %v338, 64
      %v693 = vpop.permute.xlu0 %692
      %694 = vrot.lane.b32.xlu0 %v339, 64
      %v695 = vpop.permute.xlu0 %694
      %696 = vrot.lane.b32.xlu0 %v340, 64
      %v697 = vpop.permute.xlu0 %696
      %698 = vrot.lane.b32.xlu0 %v341, 64
      %v699 = vpop.permute.xlu0 %698
      %700 = vrot.lane.b32.xlu0 %v342, 64
      %v701 = vpop.permute.xlu0 %700
      %702 = vrot.lane.b32.xlu0 %v343, 64
      %v703 = vpop.permute.xlu0 %702
      %704 = vrot.lane.b32.xlu0 %v344, 64
      %v705 = vpop.permute.xlu0 %704
      %706 = vrot.lane.b32.xlu0 %v345, 64
      %v707 = vpop.permute.xlu0 %706
      %708 = vrot.lane.b32.xlu0 %v346, 64
      %v709 = vpop.permute.xlu0 %708
      %vm710 = vcmask 523264
      %v711 = vsel %vm710, %v679, %v681
      %v712 = vsel %vm710, %v681, %v683
      %v713 = vsel %vm710, %v683, %v685
      %v714 = vsel %vm710, %v685, %v687
      %v715 = vsel %vm710, %v687, %v689
      %v716 = vsel %vm710, %v689, %v691
      %v717 = vsel %vm710, %v691, %v693
      %v718 = vsel %vm710, %v695, %v697
      %v719 = vsel %vm710, %v697, %v699
      %v720 = vsel %vm710, %v699, %v701
      %v721 = vsel %vm710, %v701, %v703
      %v722 = vsel %vm710, %v703, %v705
      %v723 = vsel %vm710, %v705, %v707
      %v724 = vsel %vm710, %v707, %v709
      %741 = vrot.lane.b32.xlu0 %v331, 63
      %v742 = vpop.permute.xlu0 %741
      %743 = vrot.lane.b32.xlu0 %v332, 63
      %v744 = vpop.permute.xlu0 %743
      %745 = vrot.lane.b32.xlu0 %v333, 63
      %v746 = vpop.permute.xlu0 %745
      %747 = vrot.lane.b32.xlu0 %v334, 63
      %v748 = vpop.permute.xlu0 %747
      %749 = vrot.lane.b32.xlu0 %v335, 63
      %v750 = vpop.permute.xlu0 %749
      %751 = vrot.lane.b32.xlu0 %v336, 63
      %v752 = vpop.permute.xlu0 %751
      %753 = vrot.lane.b32.xlu0 %v337, 63
      %v754 = vpop.permute.xlu0 %753
      %755 = vrot.lane.b32.xlu0 %v338, 63
      %v756 = vpop.permute.xlu0 %755
      %757 = vrot.lane.b32.xlu0 %v339, 63
      %v758 = vpop.permute.xlu0 %757
      %759 = vrot.lane.b32.xlu0 %v340, 63
      %v760 = vpop.permute.xlu0 %759
      %761 = vrot.lane.b32.xlu0 %v341, 63
      %v762 = vpop.permute.xlu0 %761
      %763 = vrot.lane.b32.xlu0 %v342, 63
      %v764 = vpop.permute.xlu0 %763
      %765 = vrot.lane.b32.xlu0 %v343, 63
      %v766 = vpop.permute.xlu0 %765
      %767 = vrot.lane.b32.xlu0 %v344, 63
      %v768 = vpop.permute.xlu0 %767
      %769 = vrot.lane.b32.xlu0 %v345, 63
      %v770 = vpop.permute.xlu0 %769
      %771 = vrot.lane.b32.xlu0 %v346, 63
      %v772 = vpop.permute.xlu0 %771
      %vm773 = vcmask 515072
      %v774 = vsel %vm773, %v742, %v744
      %v775 = vsel %vm773, %v744, %v746
      %v776 = vsel %vm773, %v746, %v748
      %v777 = vsel %vm773, %v748, %v750
      %v778 = vsel %vm773, %v750, %v752
      %v779 = vsel %vm773, %v752, %v754
      %v780 = vsel %vm773, %v754, %v756
      %v781 = vsel %vm773, %v758, %v760
      %v782 = vsel %vm773, %v760, %v762
      %v783 = vsel %vm773, %v762, %v764
      %v784 = vsel %vm773, %v764, %v766
      %v785 = vsel %vm773, %v766, %v768
      %v786 = vsel %vm773, %v768, %v770
      %v787 = vsel %vm773, %v770, %v772
      %804 = vrot.lane.b32.xlu0 %v331, 62
      %v805 = vpop.permute.xlu0 %804
      %806 = vrot.lane.b32.xlu0 %v332, 62
      %v807 = vpop.permute.xlu0 %806
      %808 = vrot.lane.b32.xlu0 %v333, 62
      %v809 = vpop.permute.xlu0 %808
      %810 = vrot.lane.b32.xlu0 %v334, 62
      %v811 = vpop.permute.xlu0 %810
      %812 = vrot.lane.b32.xlu0 %v335, 62
      %v813 = vpop.permute.xlu0 %812
      %814 = vrot.lane.b32.xlu0 %v336, 62
      %v815 = vpop.permute.xlu0 %814
      %816 = vrot.lane.b32.xlu0 %v337, 62
      %v817 = vpop.permute.xlu0 %816
      %818 = vrot.lane.b32.xlu0 %v338, 62
      %v819 = vpop.permute.xlu0 %818
      %820 = vrot.lane.b32.xlu0 %v339, 62
      %v821 = vpop.permute.xlu0 %820
      %822 = vrot.lane.b32.xlu0 %v340, 62
      %v823 = vpop.permute.xlu0 %822
      %824 = vrot.lane.b32.xlu0 %v341, 62
      %v825 = vpop.permute.xlu0 %824
      %826 = vrot.lane.b32.xlu0 %v342, 62
      %v827 = vpop.permute.xlu0 %826
      %828 = vrot.lane.b32.xlu0 %v343, 62
      %v829 = vpop.permute.xlu0 %828
      %830 = vrot.lane.b32.xlu0 %v344, 62
      %v831 = vpop.permute.xlu0 %830
      %832 = vrot.lane.b32.xlu0 %v345, 62
      %v833 = vpop.permute.xlu0 %832
      %834 = vrot.lane.b32.xlu0 %v346, 62
      %v835 = vpop.permute.xlu0 %834
      %vm836 = vcmask 506880
      %v837 = vsel %vm836, %v805, %v807
      %v838 = vsel %vm836, %v807, %v809
      %v839 = vsel %vm836, %v809, %v811
      %v840 = vsel %vm836, %v811, %v813
      %v841 = vsel %vm836, %v813, %v815
      %v842 = vsel %vm836, %v815, %v817
      %v843 = vsel %vm836, %v817, %v819
      %v844 = vsel %vm836, %v821, %v823
      %v845 = vsel %vm836, %v823, %v825
      %v846 = vsel %vm836, %v825, %v827
      %v847 = vsel %vm836, %v827, %v829
      %v848 = vsel %vm836, %v829, %v831
      %v849 = vsel %vm836, %v831, %v833
      %v850 = vsel %vm836, %v833, %v835
      %v867 = vld [vmem:[%s1] sm:$0xff]
      %v868 = vld [vmem:[%s1 + $0x8] sm:$0xff]
      %v869 = vld [vmem:[%s2] sm:$0xff]
      %871 = vset.pattern.permute.xlu0 0
      %872 = vperm.xlu0 %871, %v869
      %v873 = vpop.permute.xlu0 %872
      %vm875 = vcmask 130048
      %v877 = vsel %vm875, %v868, 0
      %879 = vmatprep.subr.mxu0 %v782
      %880 = vmatpush1.msra.mxu0 %v781
      %881 = vmatprep.subr.mxu0 %v775
      %882 = vmatpush1.msra.mxu0 %v774
      %883 = vmatprep.subr.mxu0 %v719
      %884 = vmatpush1.msra.mxu0 %v718
      %885 = vmatprep.subr.mxu0 %v712
      %886 = vmatpush1.msra.mxu0 %v711
      %887 = vmatprep.subr.mxu0 %v656
      %888 = vmatpush1.msra.mxu0 %v655
      %889 = vmatprep.subr.mxu0 %v649
      %890 = vmatpush1.msra.mxu0 %v648
      %891 = vmatprep.subr.mxu0 %v593
      %892 = vmatpush1.msra.mxu0 %v592
      %893 = vmatprep.subr.mxu0 %v586
      %894 = vmatpush1.msra.mxu0 %v585
      %895 = vmatprep.subr.mxu0 %v530
      %896 = vmatpush1.msra.mxu0 %v529
      %897 = vmatprep.subr.mxu0 %v523
      %898 = vmatpush1.msra.mxu0 %v522
      %899 = vmatprep.subr.mxu0 %v467
      %900 = vmatpush1.msra.mxu0 %v466
      %901 = vmatprep.subr.mxu0 %v460
      %902 = vmatpush1.msra.mxu0 %v459
      %903 = vmatprep.subr.mxu0 %v404
      %904 = vmatpush1.msra.mxu0 %v403
      %905 = vmatprep.subr.mxu0 %v397
      %906 = vmatpush1.msra.mxu0 %v396
      %907 = vmatprep.subr.mxu0 %v340
      %908 = vmatpush1.msra.mxu0 %v339
      %909 = vmatprep.subr.mxu0 %v332
      %910 = vmatpush1.msra.mxu0 %v331
      %911 = vmatprep.subr.mxu0 0.0
      %912 = vmatpush2.msra.mxu0 0.0
      %913 = vmatprep.subr.mxu0 0.0
      %914 = vmatpush2.msra.mxu0 0.0
      %915 = vmatprep.subr.mxu0 0.0
      %916 = vmatpush2.msra.mxu0 0.0
      %917 = vmatprep.subr.mxu0 0.0
      %918 = vmatpush2.msra.mxu0 0.0
      %919 = vmatprep.subr.mxu0 0.0
      %920 = vmatpush2.msra.mxu0 0.0
      %921 = vmatprep.subr.mxu0 0.0
      %922 = vmatpush2.msra.mxu0 0.0
      %923 = vmatprep.subr.mxu0 0.0
      %924 = vmatpush2.msra.mxu0 0.0
      %925 = vmatprep.subr.mxu0 0.0
      %926 = vmatpush2.msra.mxu0 0.0
      %927 = vmatprep.subr.mxu0 0.0
      %928 = vmatpush2.msra.mxu0 0.0
      %929 = vmatprep.subr.mxu0 0.0
      %930 = vmatpush2.msra.mxu0 0.0
      %931 = vmatprep.subr.mxu0 0.0
      %932 = vmatpush2.msra.mxu0 0.0
      %933 = vmatprep.subr.mxu0 0.0
      %934 = vmatpush2.msra.mxu0 0.0
      %935 = vmatprep.subr.mxu0 0.0
      %936 = vmatpush2.msra.mxu0 0.0
      %937 = vmatprep.subr.mxu0 0.0
      %938 = vmatpush2.msra.mxu0 0.0
      %939 = vmatprep.subr.mxu0 %v845
      %940 = vmatpush2.msra.mxu0 %v844
      %941 = vmatprep.subr.mxu0 %v838
      %942 = vmatpush2.msra.mxu0 %v837
      %943 = vmatprep.mubr.f32.mxu0 %v877
      %944 = vmatmul.mubr.f32.gmra.mxu0 %v867
      %v945 = vpop.f32.mrf.mxu0
      %v946 = vadd.f32 %v873, %v945
      %v947 = vpop.f32.mrf.mxu0
      %v948 = vadd.f32 %v873, %v947
      %949 = vdwg.mxu0
      %950 = vmatprep.subr.mxu0 %v784
      %951 = vmatpush1.msra.mxu0 %v783
      %952 = vmatprep.subr.mxu0 %v777
      %953 = vmatpush1.msra.mxu0 %v776
      %954 = vmatprep.subr.mxu0 %v721
      %955 = vmatpush1.msra.mxu0 %v720
      %956 = vmatprep.subr.mxu0 %v714
      %957 = vmatpush1.msra.mxu0 %v713
      %958 = vmatprep.subr.mxu0 %v658
      %959 = vmatpush1.msra.mxu0 %v657
      %960 = vmatprep.subr.mxu0 %v651
      %961 = vmatpush1.msra.mxu0 %v650
      %962 = vmatprep.subr.mxu0 %v595
      %963 = vmatpush1.msra.mxu0 %v594
      %964 = vmatprep.subr.mxu0 %v588
      %965 = vmatpush1.msra.mxu0 %v587
      %966 = vmatprep.subr.mxu0 %v532
      %967 = vmatpush1.msra.mxu0 %v531
      %968 = vmatprep.subr.mxu0 %v525
      %969 = vmatpush1.msra.mxu0 %v524
      %970 = vmatprep.subr.mxu0 %v469
      %971 = vmatpush1.msra.mxu0 %v468
      %972 = vmatprep.subr.mxu0 %v462
      %973 = vmatpush1.msra.mxu0 %v461
      %974 = vmatprep.subr.mxu0 %v406
      %975 = vmatpush1.msra.mxu0 %v405
      %976 = vmatprep.subr.mxu0 %v399
      %977 = vmatpush1.msra.mxu0 %v398
      %978 = vmatprep.subr.mxu0 %v342
      %979 = vmatpush1.msra.mxu0 %v341
      %980 = vmatprep.subr.mxu0 %v334
      %981 = vmatpush1.msra.mxu0 %v333
      %982 = vmatprep.subr.mxu0 0.0
      %983 = vmatpush2.msra.mxu0 0.0
      %984 = vmatprep.subr.mxu0 0.0
      %985 = vmatpush2.msra.mxu0 0.0
      %986 = vmatprep.subr.mxu0 0.0
      %987 = vmatpush2.msra.mxu0 0.0
      %988 = vmatprep.subr.mxu0 0.0
      %989 = vmatpush2.msra.mxu0 0.0
      %990 = vmatprep.subr.mxu0 0.0
      %991 = vmatpush2.msra.mxu0 0.0
      %992 = vmatprep.subr.mxu0 0.0
      %993 = vmatpush2.msra.mxu0 0.0
      %994 = vmatprep.subr.mxu0 0.0
      %995 = vmatpush2.msra.mxu0 0.0
      %996 = vmatprep.subr.mxu0 0.0
      %997 = vmatpush2.msra.mxu0 0.0
      %998 = vmatprep.subr.mxu0 0.0
      %999 = vmatpush2.msra.mxu0 0.0
      %1000 = vmatprep.subr.mxu0 0.0
      %1001 = vmatpush2.msra.mxu0 0.0
      %1002 = vmatprep.subr.mxu0 0.0
      %1003 = vmatpush2.msra.mxu0 0.0
      %1004 = vmatprep.subr.mxu0 0.0
      %1005 = vmatpush2.msra.mxu0 0.0
      %1006 = vmatprep.subr.mxu0 0.0
      %1007 = vmatpush2.msra.mxu0 0.0
      %1008 = vmatprep.subr.mxu0 0.0
      %1009 = vmatpush2.msra.mxu0 0.0
      %1010 = vmatprep.subr.mxu0 %v847
      %1011 = vmatpush2.msra.mxu0 %v846
      %1012 = vmatprep.subr.mxu0 %v840
      %1013 = vmatpush2.msra.mxu0 %v839
      %1014 = vmatprep.mubr.f32.mxu0 %v877
      %1015 = vmatmul.mubr.f32.gmra.mxu0 %v867
      %v1016 = vpop.f32.mrf.mxu0
      %v1017 = vadd.f32 %v873, %v1016
      %v1018 = vpop.f32.mrf.mxu0
      %v1019 = vadd.f32 %v873, %v1018
      %1020 = vdwg.mxu0
      %1021 = vmatprep.subr.mxu0 %v786
      %1022 = vmatpush1.msra.mxu0 %v785
      %1023 = vmatprep.subr.mxu0 %v779
      %1024 = vmatpush1.msra.mxu0 %v778
      %1025 = vmatprep.subr.mxu0 %v723
      %1026 = vmatpush1.msra.mxu0 %v722
      %1027 = vmatprep.subr.mxu0 %v716
      %1028 = vmatpush1.msra.mxu0 %v715
      %1029 = vmatprep.subr.mxu0 %v660
      %1030 = vmatpush1.msra.mxu0 %v659
      %1031 = vmatprep.subr.mxu0 %v653
      %1032 = vmatpush1.msra.mxu0 %v652
      %1033 = vmatprep.subr.mxu0 %v597
      %1034 = vmatpush1.msra.mxu0 %v596
      %1035 = vmatprep.subr.mxu0 %v590
      %1036 = vmatpush1.msra.mxu0 %v589
      %1037 = vmatprep.subr.mxu0 %v534
      %1038 = vmatpush1.msra.mxu0 %v533
      %1039 = vmatprep.subr.mxu0 %v527
      %1040 = vmatpush1.msra.mxu0 %v526
      %1041 = vmatprep.subr.mxu0 %v471
      %1042 = vmatpush1.msra.mxu0 %v470
      %1043 = vmatprep.subr.mxu0 %v464
      %1044 = vmatpush1.msra.mxu0 %v463
      %1045 = vmatprep.subr.mxu0 %v408
      %1046 = vmatpush1.msra.mxu0 %v407
      %1047 = vmatprep.subr.mxu0 %v401
      %1048 = vmatpush1.msra.mxu0 %v400
      %1049 = vmatprep.subr.mxu0 %v344
      %1050 = vmatpush1.msra.mxu0 %v343
      %1051 = vmatprep.subr.mxu0 %v336
      %1052 = vmatpush1.msra.mxu0 %v335
      %1053 = vmatprep.subr.mxu0 0.0
      %1054 = vmatpush2.msra.mxu0 0.0
      %1055 = vmatprep.subr.mxu0 0.0
      %1056 = vmatpush2.msra.mxu0 0.0
      %1057 = vmatprep.subr.mxu0 0.0
      %1058 = vmatpush2.msra.mxu0 0.0
      %1059 = vmatprep.subr.mxu0 0.0
      %1060 = vmatpush2.msra.mxu0 0.0
      %1061 = vmatprep.subr.mxu0 0.0
      %1062 = vmatpush2.msra.mxu0 0.0
      %1063 = vmatprep.subr.mxu0 0.0
      %1064 = vmatpush2.msra.mxu0 0.0
      %1065 = vmatprep.subr.mxu0 0.0
      %1066 = vmatpush2.msra.mxu0 0.0
      %1067 = vmatprep.subr.mxu0 0.0
      %1068 = vmatpush2.msra.mxu0 0.0
      %1069 = vmatprep.subr.mxu0 0.0
      %1070 = vmatpush2.msra.mxu0 0.0
      %1071 = vmatprep.subr.mxu0 0.0
      %1072 = vmatpush2.msra.mxu0 0.0
      %1073 = vmatprep.subr.mxu0 0.0
      %1074 = vmatpush2.msra.mxu0 0.0
      %1075 = vmatprep.subr.mxu0 0.0
      %1076 = vmatpush2.msra.mxu0 0.0
      %1077 = vmatprep.subr.mxu0 0.0
      %1078 = vmatpush2.msra.mxu0 0.0
      %1079 = vmatprep.subr.mxu0 0.0
      %1080 = vmatpush2.msra.mxu0 0.0
      %1081 = vmatprep.subr.mxu0 %v849
      %1082 = vmatpush2.msra.mxu0 %v848
      %1083 = vmatprep.subr.mxu0 %v842
      %1084 = vmatpush2.msra.mxu0 %v841
      %1085 = vmatprep.mubr.f32.mxu0 %v877
      %1086 = vmatmul.mubr.f32.gmra.mxu0 %v867
      %v1087 = vpop.f32.mrf.mxu0
      %v1088 = vadd.f32 %v873, %v1087
      %v1089 = vpop.f32.mrf.mxu0
      %v1090 = vadd.f32 %v873, %v1089
      %1091 = vdwg.mxu0
      %1092 = vmatprep.subr.mxu0 %v772
      %1093 = vmatpush1.msra.mxu0 %v787
      %1094 = vmatprep.subr.mxu0 %v756
      %1095 = vmatpush1.msra.mxu0 %v780
      %1096 = vmatprep.subr.mxu0 %v709
      %1097 = vmatpush1.msra.mxu0 %v724
      %1098 = vmatprep.subr.mxu0 %v693
      %1099 = vmatpush1.msra.mxu0 %v717
      %1100 = vmatprep.subr.mxu0 %v646
      %1101 = vmatpush1.msra.mxu0 %v661
      %1102 = vmatprep.subr.mxu0 %v630
      %1103 = vmatpush1.msra.mxu0 %v654
      %1104 = vmatprep.subr.mxu0 %v583
      %1105 = vmatpush1.msra.mxu0 %v598
      %1106 = vmatprep.subr.mxu0 %v567
      %1107 = vmatpush1.msra.mxu0 %v591
      %1108 = vmatprep.subr.mxu0 %v520
      %1109 = vmatpush1.msra.mxu0 %v535
      %1110 = vmatprep.subr.mxu0 %v504
      %1111 = vmatpush1.msra.mxu0 %v528
      %1112 = vmatprep.subr.mxu0 %v457
      %1113 = vmatpush1.msra.mxu0 %v472
      %1114 = vmatprep.subr.mxu0 %v441
      %1115 = vmatpush1.msra.mxu0 %v465
      %1116 = vmatprep.subr.mxu0 %v394
      %1117 = vmatpush1.msra.mxu0 %v409
      %1118 = vmatprep.subr.mxu0 %v378
      %1119 = vmatpush1.msra.mxu0 %v402
      %1120 = vmatprep.subr.mxu0 %v346
      %1121 = vmatpush1.msra.mxu0 %v345
      %1122 = vmatprep.subr.mxu0 %v338
      %1123 = vmatpush1.msra.mxu0 %v337
      %1124 = vmatprep.subr.mxu0 0.0
      %1125 = vmatpush2.msra.mxu0 0.0
      %1126 = vmatprep.subr.mxu0 0.0
      %1127 = vmatpush2.msra.mxu0 0.0
      %1128 = vmatprep.subr.mxu0 0.0
      %1129 = vmatpush2.msra.mxu0 0.0
      %1130 = vmatprep.subr.mxu0 0.0
      %1131 = vmatpush2.msra.mxu0 0.0
      %1132 = vmatprep.subr.mxu0 0.0
      %1133 = vmatpush2.msra.mxu0 0.0
      %1134 = vmatprep.subr.mxu0 0.0
      %1135 = vmatpush2.msra.mxu0 0.0
      %1136 = vmatprep.subr.mxu0 0.0
      %1137 = vmatpush2.msra.mxu0 0.0
      %1138 = vmatprep.subr.mxu0 0.0
      %1139 = vmatpush2.msra.mxu0 0.0
      %1140 = vmatprep.subr.mxu0 0.0
      %1141 = vmatpush2.msra.mxu0 0.0
      %1142 = vmatprep.subr.mxu0 0.0
      %1143 = vmatpush2.msra.mxu0 0.0
      %1144 = vmatprep.subr.mxu0 0.0
      %1145 = vmatpush2.msra.mxu0 0.0
      %1146 = vmatprep.subr.mxu0 0.0
      %1147 = vmatpush2.msra.mxu0 0.0
      %1148 = vmatprep.subr.mxu0 0.0
      %1149 = vmatpush2.msra.mxu0 0.0
      %1150 = vmatprep.subr.mxu0 0.0
      %1151 = vmatpush2.msra.mxu0 0.0
      %1152 = vmatprep.subr.mxu0 %v835
      %1153 = vmatpush2.msra.mxu0 %v850
      %1154 = vmatprep.subr.mxu0 %v819
      %1155 = vmatpush2.msra.mxu0 %v843
      %1156 = vmatprep.mubr.f32.mxu0 %v877
      %1157 = vmatmul.mubr.f32.gmra.mxu0 %v867
      %v1158 = vpop.f32.mrf.mxu0
      %v1159 = vadd.f32 %v873, %v1158
      %v1160 = vpop.f32.mrf.mxu0
      %v1161 = vadd.f32 %v873, %v1160
      %1162 = vdwg.mxu0
      %v1163 = vtanh.pop %v946
      %v1164 = vtanh.pop %v948
      %v1165 = vtanh.pop %v1017
      %v1166 = vtanh.pop %v1019
      %v1167 = vtanh.pop %v1088
      %v1168 = vtanh.pop %v1090
      %v1169 = vtanh.pop %v1159
      %v1170 = vtanh.pop %v1161
      %1178 = vrot.lane.b32.xlu0 %v1163, 127
      %v1179 = vpop.permute.xlu0 %1178
      %1180 = vrot.lane.b32.xlu0 %v1164, 127
      %v1181 = vpop.permute.xlu0 %1180
      %1182 = vrot.lane.b32.xlu0 %v1165, 127
      %v1183 = vpop.permute.xlu0 %1182
      %1184 = vrot.lane.b32.xlu0 %v1166, 127
      %v1185 = vpop.permute.xlu0 %1184
      %1186 = vrot.lane.b32.xlu0 %v1167, 127
      %v1187 = vpop.permute.xlu0 %1186
      %1188 = vrot.lane.b32.xlu0 %v1168, 127
      %v1189 = vpop.permute.xlu0 %1188
      %1190 = vrot.lane.b32.xlu0 %v1169, 127
      %v1191 = vpop.permute.xlu0 %1190
      %v1192 = vsel %vm395, %v1179, %v1181
      %v1193 = vsel %vm395, %v1181, %v1183
      %v1194 = vsel %vm395, %v1183, %v1185
      %v1195 = vsel %vm395, %v1185, %v1187
      %v1196 = vsel %vm395, %v1187, %v1189
      %v1197 = vsel %vm395, %v1189, %v1191
      %v1205 = vmax.f32 %v1163, %v1192
      %v1206 = vmax.f32 %v1164, %v1193
      %v1207 = vmax.f32 %v1165, %v1194
      %v1208 = vmax.f32 %v1166, %v1195
      %v1209 = vmax.f32 %v1167, %v1196
      %v1210 = vmax.f32 %v1168, %v1197
      %v1211 = vmax.f32 %v1169, %v1191
      %1212 = vrot.lane.b32.xlu0 %v1163, 126
      %v1213 = vpop.permute.xlu0 %1212
      %1214 = vrot.lane.b32.xlu0 %v1164, 126
      %v1215 = vpop.permute.xlu0 %1214
      %1216 = vrot.lane.b32.xlu0 %v1165, 126
      %v1217 = vpop.permute.xlu0 %1216
      %1218 = vrot.lane.b32.xlu0 %v1166, 126
      %v1219 = vpop.permute.xlu0 %1218
      %1220 = vrot.lane.b32.xlu0 %v1167, 126
      %v1221 = vpop.permute.xlu0 %1220
      %1222 = vrot.lane.b32.xlu0 %v1168, 126
      %v1223 = vpop.permute.xlu0 %1222
      %1224 = vrot.lane.b32.xlu0 %v1169, 126
      %v1225 = vpop.permute.xlu0 %1224
      %v1226 = vsel %vm458, %v1213, %v1215
      %v1227 = vsel %vm458, %v1215, %v1217
      %v1228 = vsel %vm458, %v1217, %v1219
      %v1229 = vsel %vm458, %v1219, %v1221
      %v1230 = vsel %vm458, %v1221, %v1223
      %v1231 = vsel %vm458, %v1223, %v1225
      %v1239 = vmax.f32 %v1205, %v1226
      %v1240 = vmax.f32 %v1206, %v1227
      %v1241 = vmax.f32 %v1207, %v1228
      %v1242 = vmax.f32 %v1208, %v1229
      %v1243 = vmax.f32 %v1209, %v1230
      %v1244 = vmax.f32 %v1210, %v1231
      %v1245 = vmax.f32 %v1211, %v1225
      %1247 = vrot.lane.b32.xlu0 %v1163, 96
      %v1248 = vpop.permute.xlu0 %1247
      %1249 = vrot.lane.b32.xlu0 %v1164, 96
      %v1250 = vpop.permute.xlu0 %1249
      %1251 = vrot.lane.b32.xlu0 %v1165, 96
      %v1252 = vpop.permute.xlu0 %1251
      %1253 = vrot.lane.b32.xlu0 %v1166, 96
      %v1254 = vpop.permute.xlu0 %1253
      %1255 = vrot.lane.b32.xlu0 %v1167, 96
      %v1256 = vpop.permute.xlu0 %1255
      %1257 = vrot.lane.b32.xlu0 %v1168, 96
      %v1258 = vpop.permute.xlu0 %1257
      %1259 = vrot.lane.b32.xlu0 %v1169, 96
      %v1260 = vpop.permute.xlu0 %1259
      %1261 = vrot.lane.b32.xlu0 %v1170, 96
      %v1262 = vpop.permute.xlu0 %1261
      %v1263 = vsel %vm521, %v1248, %v1250
      %v1264 = vsel %vm521, %v1250, %v1252
      %v1265 = vsel %vm521, %v1252, %v1254
      %v1266 = vsel %vm521, %v1254, %v1256
      %v1267 = vsel %vm521, %v1256, %v1258
      %v1268 = vsel %vm521, %v1258, %v1260
      %v1269 = vsel %vm521, %v1260, %v1262
      %v1277 = vmax.f32 %v1239, %v1263
      %v1278 = vmax.f32 %v1240, %v1264
      %v1279 = vmax.f32 %v1241, %v1265
      %v1280 = vmax.f32 %v1242, %v1266
      %v1281 = vmax.f32 %v1243, %v1267
      %v1282 = vmax.f32 %v1244, %v1268
      %v1283 = vmax.f32 %v1245, %v1269
      %1284 = vrot.lane.b32.xlu0 %v1163, 95
      %v1285 = vpop.permute.xlu0 %1284
      %1286 = vrot.lane.b32.xlu0 %v1164, 95
      %v1287 = vpop.permute.xlu0 %1286
      %1288 = vrot.lane.b32.xlu0 %v1165, 95
      %v1289 = vpop.permute.xlu0 %1288
      %1290 = vrot.lane.b32.xlu0 %v1166, 95
      %v1291 = vpop.permute.xlu0 %1290
      %1292 = vrot.lane.b32.xlu0 %v1167, 95
      %v1293 = vpop.permute.xlu0 %1292
      %1294 = vrot.lane.b32.xlu0 %v1168, 95
      %v1295 = vpop.permute.xlu0 %1294
      %1296 = vrot.lane.b32.xlu0 %v1169, 95
      %v1297 = vpop.permute.xlu0 %1296
      %1298 = vrot.lane.b32.xlu0 %v1170, 95
      %v1299 = vpop.permute.xlu0 %1298
      %v1300 = vsel %vm584, %v1285, %v1287
      %v1301 = vsel %vm584, %v1287, %v1289
      %v1302 = vsel %vm584, %v1289, %v1291
      %v1303 = vsel %vm584, %v1291, %v1293
      %v1304 = vsel %vm584, %v1293, %v1295
      %v1305 = vsel %vm584, %v1295, %v1297
      %v1306 = vsel %vm584, %v1297, %v1299
      %v1314 = vmax.f32 %v1277, %v1300
      %v1315 = vmax.f32 %v1278, %v1301
      %v1316 = vmax.f32 %v1279, %v1302
      %v1317 = vmax.f32 %v1280, %v1303
      %v1318 = vmax.f32 %v1281, %v1304
      %v1319 = vmax.f32 %v1282, %v1305
      %v1320 = vmax.f32 %v1283, %v1306
      %1321 = vrot.lane.b32.xlu0 %v1163, 94
      %v1322 = vpop.permute.xlu0 %1321
      %1323 = vrot.lane.b32.xlu0 %v1164, 94
      %v1324 = vpop.permute.xlu0 %1323
      %1325 = vrot.lane.b32.xlu0 %v1165, 94
      %v1326 = vpop.permute.xlu0 %1325
      %1327 = vrot.lane.b32.xlu0 %v1166, 94
      %v1328 = vpop.permute.xlu0 %1327
      %1329 = vrot.lane.b32.xlu0 %v1167, 94
      %v1330 = vpop.permute.xlu0 %1329
      %1331 = vrot.lane.b32.xlu0 %v1168, 94
      %v1332 = vpop.permute.xlu0 %1331
      %1333 = vrot.lane.b32.xlu0 %v1169, 94
      %v1334 = vpop.permute.xlu0 %1333
      %1335 = vrot.lane.b32.xlu0 %v1170, 94
      %v1336 = vpop.permute.xlu0 %1335
      %v1337 = vsel %vm647, %v1322, %v1324
      %v1338 = vsel %vm647, %v1324, %v1326
      %v1339 = vsel %vm647, %v1326, %v1328
      %v1340 = vsel %vm647, %v1328, %v1330
      %v1341 = vsel %vm647, %v1330, %v1332
      %v1342 = vsel %vm647, %v1332, %v1334
      %v1343 = vsel %vm647, %v1334, %v1336
      %v1351 = vmax.f32 %v1314, %v1337
      %v1352 = vmax.f32 %v1315, %v1338
      %v1353 = vmax.f32 %v1316, %v1339
      %v1354 = vmax.f32 %v1317, %v1340
      %v1355 = vmax.f32 %v1318, %v1341
      %v1356 = vmax.f32 %v1319, %v1342
      %v1357 = vmax.f32 %v1320, %v1343
      %1358 = vrot.lane.b32.xlu0 %v1163, 64
      %v1359 = vpop.permute.xlu0 %1358
      %1360 = vrot.lane.b32.xlu0 %v1164, 64
      %v1361 = vpop.permute.xlu0 %1360
      %1362 = vrot.lane.b32.xlu0 %v1165, 64
      %v1363 = vpop.permute.xlu0 %1362
      %1364 = vrot.lane.b32.xlu0 %v1166, 64
      %v1365 = vpop.permute.xlu0 %1364
      %1366 = vrot.lane.b32.xlu0 %v1167, 64
      %v1367 = vpop.permute.xlu0 %1366
      %1368 = vrot.lane.b32.xlu0 %v1168, 64
      %v1369 = vpop.permute.xlu0 %1368
      %1370 = vrot.lane.b32.xlu0 %v1169, 64
      %v1371 = vpop.permute.xlu0 %1370
      %1372 = vrot.lane.b32.xlu0 %v1170, 64
      %v1373 = vpop.permute.xlu0 %1372
      %v1374 = vsel %vm710, %v1359, %v1361
      %v1375 = vsel %vm710, %v1361, %v1363
      %v1376 = vsel %vm710, %v1363, %v1365
      %v1377 = vsel %vm710, %v1365, %v1367
      %v1378 = vsel %vm710, %v1367, %v1369
      %v1379 = vsel %vm710, %v1369, %v1371
      %v1380 = vsel %vm710, %v1371, %v1373
      %v1388 = vmax.f32 %v1351, %v1374
      %v1389 = vmax.f32 %v1352, %v1375
      %v1390 = vmax.f32 %v1353, %v1376
      %v1391 = vmax.f32 %v1354, %v1377
      %v1392 = vmax.f32 %v1355, %v1378
      %v1393 = vmax.f32 %v1356, %v1379
      %v1394 = vmax.f32 %v1357, %v1380
      %1395 = vrot.lane.b32.xlu0 %v1163, 63
      %v1396 = vpop.permute.xlu0 %1395
      %1397 = vrot.lane.b32.xlu0 %v1164, 63
      %v1398 = vpop.permute.xlu0 %1397
      %1399 = vrot.lane.b32.xlu0 %v1165, 63
      %v1400 = vpop.permute.xlu0 %1399
      %1401 = vrot.lane.b32.xlu0 %v1166, 63
      %v1402 = vpop.permute.xlu0 %1401
      %1403 = vrot.lane.b32.xlu0 %v1167, 63
      %v1404 = vpop.permute.xlu0 %1403
      %1405 = vrot.lane.b32.xlu0 %v1168, 63
      %v1406 = vpop.permute.xlu0 %1405
      %1407 = vrot.lane.b32.xlu0 %v1169, 63
      %v1408 = vpop.permute.xlu0 %1407
      %1409 = vrot.lane.b32.xlu0 %v1170, 63
      %v1410 = vpop.permute.xlu0 %1409
      %v1411 = vsel %vm773, %v1396, %v1398
      %v1412 = vsel %vm773, %v1398, %v1400
      %v1413 = vsel %vm773, %v1400, %v1402
      %v1414 = vsel %vm773, %v1402, %v1404
      %v1415 = vsel %vm773, %v1404, %v1406
      %v1416 = vsel %vm773, %v1406, %v1408
      %v1417 = vsel %vm773, %v1408, %v1410
      %v1425 = vmax.f32 %v1388, %v1411
      %v1426 = vmax.f32 %v1389, %v1412
      %v1427 = vmax.f32 %v1390, %v1413
      %v1428 = vmax.f32 %v1391, %v1414
      %v1429 = vmax.f32 %v1392, %v1415
      %v1430 = vmax.f32 %v1393, %v1416
      %v1431 = vmax.f32 %v1394, %v1417
      %1432 = vrot.lane.b32.xlu0 %v1163, 62
      %v1433 = vpop.permute.xlu0 %1432
      %1434 = vrot.lane.b32.xlu0 %v1164, 62
      %v1435 = vpop.permute.xlu0 %1434
      %1436 = vrot.lane.b32.xlu0 %v1165, 62
      %v1437 = vpop.permute.xlu0 %1436
      %1438 = vrot.lane.b32.xlu0 %v1166, 62
      %v1439 = vpop.permute.xlu0 %1438
      %1440 = vrot.lane.b32.xlu0 %v1167, 62
      %v1441 = vpop.permute.xlu0 %1440
      %1442 = vrot.lane.b32.xlu0 %v1168, 62
      %v1443 = vpop.permute.xlu0 %1442
      %1444 = vrot.lane.b32.xlu0 %v1169, 62
      %v1445 = vpop.permute.xlu0 %1444
      %1446 = vrot.lane.b32.xlu0 %v1170, 62
      %v1447 = vpop.permute.xlu0 %1446
      %v1448 = vsel %vm836, %v1433, %v1435
      %v1449 = vsel %vm836, %v1435, %v1437
      %v1450 = vsel %vm836, %v1437, %v1439
      %v1451 = vsel %vm836, %v1439, %v1441
      %v1452 = vsel %vm836, %v1441, %v1443
      %v1453 = vsel %vm836, %v1443, %v1445
      %v1454 = vsel %vm836, %v1445, %v1447
      %v1462 = vmax.f32 %v1425, %v1448
      %v1463 = vmax.f32 %v1426, %v1449
      %v1464 = vmax.f32 %v1427, %v1450
      %v1465 = vmax.f32 %v1428, %v1451
      %v1466 = vmax.f32 %v1429, %v1452
      %v1467 = vmax.f32 %v1430, %v1453
      %v1468 = vmax.f32 %v1431, %v1454
      %1475 = vrot.lane.b32.xlu0 %v1462, 125
      %v1476 = vpop.permute.xlu0 %1475
      %1477 = vrot.lane.b32.xlu0 %v1463, 125
      %v1478 = vpop.permute.xlu0 %1477
      %1479 = vrot.lane.b32.xlu0 %v1464, 125
      %v1480 = vpop.permute.xlu0 %1479
      %1481 = vrot.lane.b32.xlu0 %v1465, 125
      %v1482 = vpop.permute.xlu0 %1481
      %1483 = vrot.lane.b32.xlu0 %v1466, 125
      %v1484 = vpop.permute.xlu0 %1483
      %1485 = vrot.lane.b32.xlu0 %v1467, 125
      %v1486 = vpop.permute.xlu0 %1485
      %vm1487 = vcmask 1022976
      %v1488 = vsel %vm1487, %v1476, %v1478
      %v1489 = vsel %vm1487, %v1478, %v1480
      %v1490 = vsel %vm1487, %v1480, %v1482
      %v1491 = vsel %vm1487, %v1482, %v1484
      %v1492 = vsel %vm1487, %v1484, %v1486
      %1499 = vrot.lane.b32.xlu0 %v1462, 122
      %v1500 = vpop.permute.xlu0 %1499
      %1501 = vrot.lane.b32.xlu0 %v1463, 122
      %v1502 = vpop.permute.xlu0 %1501
      %1503 = vrot.lane.b32.xlu0 %v1464, 122
      %v1504 = vpop.permute.xlu0 %1503
      %1505 = vrot.lane.b32.xlu0 %v1465, 122
      %v1506 = vpop.permute.xlu0 %1505
      %1507 = vrot.lane.b32.xlu0 %v1466, 122
      %v1508 = vpop.permute.xlu0 %1507
      %1509 = vrot.lane.b32.xlu0 %v1467, 122
      %v1510 = vpop.permute.xlu0 %1509
      %vm1511 = vcmask 998400
      %v1512 = vsel %vm1511, %v1500, %v1502
      %v1513 = vsel %vm1511, %v1502, %v1504
      %v1514 = vsel %vm1511, %v1504, %v1506
      %v1515 = vsel %vm1511, %v1506, %v1508
      %v1516 = vsel %vm1511, %v1508, %v1510
      %1524 = vrot.lane.b32.xlu0 %v1462, 32
      %v1525 = vpop.permute.xlu0 %1524
      %1526 = vrot.lane.b32.xlu0 %v1463, 32
      %v1527 = vpop.permute.xlu0 %1526
      %1528 = vrot.lane.b32.xlu0 %v1464, 32
      %v1529 = vpop.permute.xlu0 %1528
      %1530 = vrot.lane.b32.xlu0 %v1465, 32
      %v1531 = vpop.permute.xlu0 %1530
      %1532 = vrot.lane.b32.xlu0 %v1466, 32
      %v1533 = vpop.permute.xlu0 %1532
      %1534 = vrot.lane.b32.xlu0 %v1467, 32
      %v1535 = vpop.permute.xlu0 %1534
      %1536 = vrot.lane.b32.xlu0 %v1468, 32
      %v1537 = vpop.permute.xlu0 %1536
      %vm1538 = vcmask 261120
      %v1539 = vsel %vm1538, %v1525, %v1527
      %v1540 = vsel %vm1538, %v1527, %v1529
      %v1541 = vsel %vm1538, %v1529, %v1531
      %v1542 = vsel %vm1538, %v1531, %v1533
      %v1543 = vsel %vm1538, %v1533, %v1535
      %v1544 = vsel %vm1538, %v1535, %v1537
      %1551 = vrot.lane.b32.xlu0 %v1462, 29
      %v1552 = vpop.permute.xlu0 %1551
      %1553 = vrot.lane.b32.xlu0 %v1463, 29
      %v1554 = vpop.permute.xlu0 %1553
      %1555 = vrot.lane.b32.xlu0 %v1464, 29
      %v1556 = vpop.permute.xlu0 %1555
      %1557 = vrot.lane.b32.xlu0 %v1465, 29
      %v1558 = vpop.permute.xlu0 %1557
      %1559 = vrot.lane.b32.xlu0 %v1466, 29
      %v1560 = vpop.permute.xlu0 %1559
      %1561 = vrot.lane.b32.xlu0 %v1467, 29
      %v1562 = vpop.permute.xlu0 %1561
      %1563 = vrot.lane.b32.xlu0 %v1468, 29
      %v1564 = vpop.permute.xlu0 %1563
      %vm1565 = vcmask 236544
      %v1566 = vsel %vm1565, %v1552, %v1554
      %v1567 = vsel %vm1565, %v1554, %v1556
      %v1568 = vsel %vm1565, %v1556, %v1558
      %v1569 = vsel %vm1565, %v1558, %v1560
      %v1570 = vsel %vm1565, %v1560, %v1562
      %v1571 = vsel %vm1565, %v1562, %v1564
      %1578 = vrot.lane.b32.xlu0 %v1462, 26
      %v1579 = vpop.permute.xlu0 %1578
      %1580 = vrot.lane.b32.xlu0 %v1463, 26
      %v1581 = vpop.permute.xlu0 %1580
      %1582 = vrot.lane.b32.xlu0 %v1464, 26
      %v1583 = vpop.permute.xlu0 %1582
      %1584 = vrot.lane.b32.xlu0 %v1465, 26
      %v1585 = vpop.permute.xlu0 %1584
      %1586 = vrot.lane.b32.xlu0 %v1466, 26
      %v1587 = vpop.permute.xlu0 %1586
      %1588 = vrot.lane.b32.xlu0 %v1467, 26
      %v1589 = vpop.permute.xlu0 %1588
      %1590 = vrot.lane.b32.xlu0 %v1468, 26
      %v1591 = vpop.permute.xlu0 %1590
      %vm1592 = vcmask 211968
      %v1593 = vsel %vm1592, %v1579, %v1581
      %v1594 = vsel %vm1592, %v1581, %v1583
      %v1595 = vsel %vm1592, %v1583, %v1585
      %v1596 = vsel %vm1592, %v1585, %v1587
      %v1597 = vsel %vm1592, %v1587, %v1589
      %v1598 = vsel %vm1592, %v1589, %v1591
      %1605 = vrot.lane.b32.xlu0 %v1463, 64
      %v1606 = vpop.permute.xlu0 %1605
      %1607 = vrot.lane.b32.xlu0 %v1464, 64
      %v1608 = vpop.permute.xlu0 %1607
      %1609 = vrot.lane.b32.xlu0 %v1465, 64
      %v1610 = vpop.permute.xlu0 %1609
      %1611 = vrot.lane.b32.xlu0 %v1466, 64
      %v1612 = vpop.permute.xlu0 %1611
      %1613 = vrot.lane.b32.xlu0 %v1467, 64
      %v1614 = vpop.permute.xlu0 %1613
      %1615 = vrot.lane.b32.xlu0 %v1468, 64
      %v1616 = vpop.permute.xlu0 %1615
      %v1617 = vsel %vm710, %v1606, %v1608
      %v1618 = vsel %vm710, %v1608, %v1610
      %v1619 = vsel %vm710, %v1610, %v1612
      %v1620 = vsel %vm710, %v1612, %v1614
      %v1621 = vsel %vm710, %v1614, %v1616
      %1628 = vrot.lane.b32.xlu0 %v1463, 61
      %v1629 = vpop.permute.xlu0 %1628
      %1630 = vrot.lane.b32.xlu0 %v1464, 61
      %v1631 = vpop.permute.xlu0 %1630
      %1632 = vrot.lane.b32.xlu0 %v1465, 61
      %v1633 = vpop.permute.xlu0 %1632
      %1634 = vrot.lane.b32.xlu0 %v1466, 61
      %v1635 = vpop.permute.xlu0 %1634
      %1636 = vrot.lane.b32.xlu0 %v1467, 61
      %v1637 = vpop.permute.xlu0 %1636
      %1638 = vrot.lane.b32.xlu0 %v1468, 61
      %v1639 = vpop.permute.xlu0 %1638
      %vm1640 = vcmask 498688
      %v1641 = vsel %vm1640, %v1629, %v1631
      %v1642 = vsel %vm1640, %v1631, %v1633
      %v1643 = vsel %vm1640, %v1633, %v1635
      %v1644 = vsel %vm1640, %v1635, %v1637
      %v1645 = vsel %vm1640, %v1637, %v1639
      %1652 = vrot.lane.b32.xlu0 %v1463, 58
      %v1653 = vpop.permute.xlu0 %1652
      %1654 = vrot.lane.b32.xlu0 %v1464, 58
      %v1655 = vpop.permute.xlu0 %1654
      %1656 = vrot.lane.b32.xlu0 %v1465, 58
      %v1657 = vpop.permute.xlu0 %1656
      %1658 = vrot.lane.b32.xlu0 %v1466, 58
      %v1659 = vpop.permute.xlu0 %1658
      %1660 = vrot.lane.b32.xlu0 %v1467, 58
      %v1661 = vpop.permute.xlu0 %1660
      %1662 = vrot.lane.b32.xlu0 %v1468, 58
      %v1663 = vpop.permute.xlu0 %1662
      %vm1664 = vcmask 474112
      %v1665 = vsel %vm1664, %v1653, %v1655
      %v1666 = vsel %vm1664, %v1655, %v1657
      %v1667 = vsel %vm1664, %v1657, %v1659
      %v1668 = vsel %vm1664, %v1659, %v1661
      %v1669 = vsel %vm1664, %v1661, %v1663
      %v1676 = vld [vmem:[%s3] sm:$0xff]
      %v1677 = vld [vmem:[%s4] sm:$0xff]
      %1679 = vset.pattern.permute.xlu0 0
      %1680 = vperm.xlu0 %1679, %v1677
      %v1681 = vpop.permute.xlu0 %1680
      %vm1683 = vcmask 588800
      %v1685 = vsel %vm1683, %v1676, 0
      %1687 = vmatprep.subr.mxu0 0.0
      %1688 = vmatpush1.msra.mxu0 0.0
      %1689 = vmatprep.subr.mxu0 0.0
      %1690 = vmatpush1.msra.mxu0 0.0
      %1691 = vmatprep.subr.mxu0 0.0
      %1692 = vmatpush1.msra.mxu0 0.0
      %1693 = vmatprep.subr.mxu0 0.0
      %1694 = vmatpush1.msra.mxu0 0.0
      %1695 = vmatprep.subr.mxu0 0.0
      %1696 = vmatpush1.msra.mxu0 0.0
      %1697 = vmatprep.subr.mxu0 0.0
      %1698 = vmatpush1.msra.mxu0 0.0
      %1699 = vmatprep.subr.mxu0 0.0
      %1700 = vmatpush1.msra.mxu0 0.0
      %1701 = vmatprep.subr.mxu0 %v1666
      %1702 = vmatpush1.msra.mxu0 %v1665
      %1703 = vmatprep.subr.mxu0 %v1642
      %1704 = vmatpush1.msra.mxu0 %v1641
      %1705 = vmatprep.subr.mxu0 %v1618
      %1706 = vmatpush1.msra.mxu0 %v1617
      %1707 = vmatprep.subr.mxu0 %v1594
      %1708 = vmatpush1.msra.mxu0 %v1593
      %1709 = vmatprep.subr.mxu0 %v1567
      %1710 = vmatpush1.msra.mxu0 %v1566
      %1711 = vmatprep.subr.mxu0 %v1540
      %1712 = vmatpush1.msra.mxu0 %v1539
      %1713 = vmatprep.subr.mxu0 %v1513
      %1714 = vmatpush1.msra.mxu0 %v1512
      %1715 = vmatprep.subr.mxu0 %v1489
      %1716 = vmatpush1.msra.mxu0 %v1488
      %1717 = vmatprep.subr.mxu0 %v1463
      %1718 = vmatpush1.msra.mxu0 %v1462
      %1719 = vmatprep.subr.mxu0 0.0
      %1720 = vmatpush2.msra.mxu0 0.0
      %1721 = vmatprep.subr.mxu0 0.0
      %1722 = vmatpush2.msra.mxu0 0.0
      %1723 = vmatprep.subr.mxu0 0.0
      %1724 = vmatpush2.msra.mxu0 0.0
      %1725 = vmatprep.subr.mxu0 0.0
      %1726 = vmatpush2.msra.mxu0 0.0
      %1727 = vmatprep.subr.mxu0 0.0
      %1728 = vmatpush2.msra.mxu0 0.0
      %1729 = vmatprep.subr.mxu0 0.0
      %1730 = vmatpush2.msra.mxu0 0.0
      %1731 = vmatprep.subr.mxu0 0.0
      %1732 = vmatpush2.msra.mxu0 0.0
      %1733 = vmatprep.subr.mxu0 0.0
      %1734 = vmatpush2.msra.mxu0 0.0
      %1735 = vmatprep.subr.mxu0 0.0
      %1736 = vmatpush2.msra.mxu0 0.0
      %1737 = vmatprep.subr.mxu0 0.0
      %1738 = vmatpush2.msra.mxu0 0.0
      %1739 = vmatprep.subr.mxu0 0.0
      %1740 = vmatpush2.msra.mxu0 0.0
      %1741 = vmatprep.subr.mxu0 0.0
      %1742 = vmatpush2.msra.mxu0 0.0
      %1743 = vmatprep.subr.mxu0 0.0
      %1744 = vmatpush2.msra.mxu0 0.0
      %1745 = vmatprep.subr.mxu0 0.0
      %1746 = vmatpush2.msra.mxu0 0.0
      %1747 = vmatprep.subr.mxu0 0.0
      %1748 = vmatpush2.msra.mxu0 0.0
      %1749 = vmatprep.subr.mxu0 0.0
      %1750 = vmatpush2.msra.mxu0 0.0
      %1751 = vmatprep.mubr.f32.mxu0 0.0
      %1752 = vmatmul.mubr.f32.gmra.mxu0 %v1685
      %v1753 = vpop.f32.mrf.mxu0
      %v1754 = vadd.f32 %v1681, %v1753
      %v1755 = vpop.f32.mrf.mxu0
      %v1756 = vadd.f32 %v1681, %v1755
      %1757 = vdwg.mxu0
      %1758 = vmatprep.subr.mxu0 0.0
      %1759 = vmatpush1.msra.mxu0 0.0
      %1760 = vmatprep.subr.mxu0 0.0
      %1761 = vmatpush1.msra.mxu0 0.0
      %1762 = vmatprep.subr.mxu0 0.0
      %1763 = vmatpush1.msra.mxu0 0.0
      %1764 = vmatprep.subr.mxu0 0.0
      %1765 = vmatpush1.msra.mxu0 0.0
      %1766 = vmatprep.subr.mxu0 0.0
      %1767 = vmatpush1.msra.mxu0 0.0
      %1768 = vmatprep.subr.mxu0 0.0
      %1769 = vmatpush1.msra.mxu0 0.0
      %1770 = vmatprep.subr.mxu0 0.0
      %1771 = vmatpush1.msra.mxu0 0.0
      %1772 = vmatprep.subr.mxu0 %v1668
      %1773 = vmatpush1.msra.mxu0 %v1667
      %1774 = vmatprep.subr.mxu0 %v1644
      %1775 = vmatpush1.msra.mxu0 %v1643
      %1776 = vmatprep.subr.mxu0 %v1620
      %1777 = vmatpush1.msra.mxu0 %v1619
      %1778 = vmatprep.subr.mxu0 %v1596
      %1779 = vmatpush1.msra.mxu0 %v1595
      %1780 = vmatprep.subr.mxu0 %v1569
      %1781 = vmatpush1.msra.mxu0 %v1568
      %1782 = vmatprep.subr.mxu0 %v1542
      %1783 = vmatpush1.msra.mxu0 %v1541
      %1784 = vmatprep.subr.mxu0 %v1515
      %1785 = vmatpush1.msra.mxu0 %v1514
      %1786 = vmatprep.subr.mxu0 %v1491
      %1787 = vmatpush1.msra.mxu0 %v1490
      %1788 = vmatprep.subr.mxu0 %v1465
      %1789 = vmatpush1.msra.mxu0 %v1464
      %1790 = vmatprep.subr.mxu0 0.0
      %1791 = vmatpush2.msra.mxu0 0.0
      %1792 = vmatprep.subr.mxu0 0.0
      %1793 = vmatpush2.msra.mxu0 0.0
      %1794 = vmatprep.subr.mxu0 0.0
      %1795 = vmatpush2.msra.mxu0 0.0
      %1796 = vmatprep.subr.mxu0 0.0
      %1797 = vmatpush2.msra.mxu0 0.0
      %1798 = vmatprep.subr.mxu0 0.0
      %1799 = vmatpush2.msra.mxu0 0.0
      %1800 = vmatprep.subr.mxu0 0.0
      %1801 = vmatpush2.msra.mxu0 0.0
      %1802 = vmatprep.subr.mxu0 0.0
      %1803 = vmatpush2.msra.mxu0 0.0
      %1804 = vmatprep.subr.mxu0 0.0
      %1805 = vmatpush2.msra.mxu0 0.0
      %1806 = vmatprep.subr.mxu0 0.0
      %1807 = vmatpush2.msra.mxu0 0.0
      %1808 = vmatprep.subr.mxu0 0.0
      %1809 = vmatpush2.msra.mxu0 0.0
      %1810 = vmatprep.subr.mxu0 0.0
      %1811 = vmatpush2.msra.mxu0 0.0
      %1812 = vmatprep.subr.mxu0 0.0
      %1813 = vmatpush2.msra.mxu0 0.0
      %1814 = vmatprep.subr.mxu0 0.0
      %1815 = vmatpush2.msra.mxu0 0.0
      %1816 = vmatprep.subr.mxu0 0.0
      %1817 = vmatpush2.msra.mxu0 0.0
      %1818 = vmatprep.subr.mxu0 0.0
      %1819 = vmatpush2.msra.mxu0 0.0
      %1820 = vmatprep.subr.mxu0 0.0
      %1821 = vmatpush2.msra.mxu0 0.0
      %1822 = vmatprep.mubr.f32.mxu0 0.0
      %1823 = vmatmul.mubr.f32.gmra.mxu0 %v1685
      %v1824 = vpop.f32.mrf.mxu0
      %v1825 = vadd.f32 %v1681, %v1824
      %v1826 = vpop.f32.mrf.mxu0
      %v1827 = vadd.f32 %v1681, %v1826
      %1828 = vdwg.mxu0
      %1829 = vmatprep.subr.mxu0 0.0
      %1830 = vmatpush1.msra.mxu0 0.0
      %1831 = vmatprep.subr.mxu0 0.0
      %1832 = vmatpush1.msra.mxu0 0.0
      %1833 = vmatprep.subr.mxu0 0.0
      %1834 = vmatpush1.msra.mxu0 0.0
      %1835 = vmatprep.subr.mxu0 0.0
      %1836 = vmatpush1.msra.mxu0 0.0
      %1837 = vmatprep.subr.mxu0 0.0
      %1838 = vmatpush1.msra.mxu0 0.0
      %1839 = vmatprep.subr.mxu0 0.0
      %1840 = vmatpush1.msra.mxu0 0.0
      %1841 = vmatprep.subr.mxu0 0.0
      %1842 = vmatpush1.msra.mxu0 0.0
      %1843 = vmatprep.subr.mxu0 %v1663
      %1844 = vmatpush1.msra.mxu0 %v1669
      %1845 = vmatprep.subr.mxu0 %v1639
      %1846 = vmatpush1.msra.mxu0 %v1645
      %1847 = vmatprep.subr.mxu0 %v1616
      %1848 = vmatpush1.msra.mxu0 %v1621
      %1849 = vmatprep.subr.mxu0 %v1598
      %1850 = vmatpush1.msra.mxu0 %v1597
      %1851 = vmatprep.subr.mxu0 %v1571
      %1852 = vmatpush1.msra.mxu0 %v1570
      %1853 = vmatprep.subr.mxu0 %v1544
      %1854 = vmatpush1.msra.mxu0 %v1543
      %1855 = vmatprep.subr.mxu0 %v1510
      %1856 = vmatpush1.msra.mxu0 %v1516
      %1857 = vmatprep.subr.mxu0 %v1486
      %1858 = vmatpush1.msra.mxu0 %v1492
      %1859 = vmatprep.subr.mxu0 %v1467
      %1860 = vmatpush1.msra.mxu0 %v1466
      %1861 = vmatprep.subr.mxu0 0.0
      %1862 = vmatpush2.msra.mxu0 0.0
      %1863 = vmatprep.subr.mxu0 0.0
      %1864 = vmatpush2.msra.mxu0 0.0
      %1865 = vmatprep.subr.mxu0 0.0
      %1866 = vmatpush2.msra.mxu0 0.0
      %1867 = vmatprep.subr.mxu0 0.0
      %1868 = vmatpush2.msra.mxu0 0.0
      %1869 = vmatprep.subr.mxu0 0.0
      %1870 = vmatpush2.msra.mxu0 0.0
      %1871 = vmatprep.subr.mxu0 0.0
      %1872 = vmatpush2.msra.mxu0 0.0
      %1873 = vmatprep.subr.mxu0 0.0
      %1874 = vmatpush2.msra.mxu0 0.0
      %1875 = vmatprep.subr.mxu0 0.0
      %1876 = vmatpush2.msra.mxu0 0.0
      %1877 = vmatprep.subr.mxu0 0.0
      %1878 = vmatpush2.msra.mxu0 0.0
      %1879 = vmatprep.subr.mxu0 0.0
      %1880 = vmatpush2.msra.mxu0 0.0
      %1881 = vmatprep.subr.mxu0 0.0
      %1882 = vmatpush2.msra.mxu0 0.0
      %1883 = vmatprep.subr.mxu0 0.0
      %1884 = vmatpush2.msra.mxu0 0.0
      %1885 = vmatprep.subr.mxu0 0.0
      %1886 = vmatpush2.msra.mxu0 0.0
      %1887 = vmatprep.subr.mxu0 0.0
      %1888 = vmatpush2.msra.mxu0 0.0
      %1889 = vmatprep.subr.mxu0 0.0
      %1890 = vmatpush2.msra.mxu0 0.0
      %1891 = vmatprep.subr.mxu0 0.0
      %1892 = vmatpush2.msra.mxu0 0.0
      %1893 = vmatprep.mubr.f32.mxu0 0.0
      %1894 = vmatmul.mubr.f32.gmra.mxu0 %v1685
      %v1895 = vpop.f32.mrf.mxu0
      %v1896 = vadd.f32 %v1681, %v1895
      %v1897 = vpop.f32.mrf.mxu0
      %1898 = vdwg.mxu0
      %v1899 = vtanh.pop %v1754
      %v1900 = vtanh.pop %v1756
      %v1901 = vtanh.pop %v1825
      %v1902 = vtanh.pop %v1827
      %v1903 = vtanh.pop %v1896
      %1908 = vrot.lane.b32.xlu0 %v1899, 125
      %v1909 = vpop.permute.xlu0 %1908
      %1910 = vrot.lane.b32.xlu0 %v1900, 125
      %v1911 = vpop.permute.xlu0 %1910
      %1912 = vrot.lane.b32.xlu0 %v1901, 125
      %v1913 = vpop.permute.xlu0 %1912
      %1914 = vrot.lane.b32.xlu0 %v1902, 125
      %v1915 = vpop.permute.xlu0 %1914
      %v1916 = vsel %vm1487, %v1909, %v1911
      %v1917 = vsel %vm1487, %v1913, %v1915
      %v1920 = vmax.f32 %v1899, %v1916
      %v1921 = vmax.f32 %v1901, %v1917
      %1922 = vrot.lane.b32.xlu0 %v1899, 122
      %v1923 = vpop.permute.xlu0 %1922
      %1924 = vrot.lane.b32.xlu0 %v1900, 122
      %v1925 = vpop.permute.xlu0 %1924
      %1926 = vrot.lane.b32.xlu0 %v1901, 122
      %v1927 = vpop.permute.xlu0 %1926
      %1928 = vrot.lane.b32.xlu0 %v1902, 122
      %v1929 = vpop.permute.xlu0 %1928
      %v1930 = vsel %vm1511, %v1923, %v1925
      %v1931 = vsel %vm1511, %v1927, %v1929
      %v1934 = vmax.f32 %v1920, %v1930
      %v1935 = vmax.f32 %v1921, %v1931
      %1936 = vrot.lane.b32.xlu0 %v1899, 32
      %v1937 = vpop.permute.xlu0 %1936
      %1938 = vrot.lane.b32.xlu0 %v1900, 32
      %v1939 = vpop.permute.xlu0 %1938
      %1940 = vrot.lane.b32.xlu0 %v1901, 32
      %v1941 = vpop.permute.xlu0 %1940
      %1942 = vrot.lane.b32.xlu0 %v1902, 32
      %v1943 = vpop.permute.xlu0 %1942
      %v1944 = vsel %vm1538, %v1937, %v1939
      %v1945 = vsel %vm1538, %v1941, %v1943
      %v1948 = vmax.f32 %v1934, %v1944
      %v1949 = vmax.f32 %v1935, %v1945
      %1950 = vrot.lane.b32.xlu0 %v1899, 29
      %v1951 = vpop.permute.xlu0 %1950
      %1952 = vrot.lane.b32.xlu0 %v1900, 29
      %v1953 = vpop.permute.xlu0 %1952
      %1954 = vrot.lane.b32.xlu0 %v1901, 29
      %v1955 = vpop.permute.xlu0 %1954
      %1956 = vrot.lane.b32.xlu0 %v1902, 29
      %v1957 = vpop.permute.xlu0 %1956
      %v1958 = vsel %vm1565, %v1951, %v1953
      %v1959 = vsel %vm1565, %v1955, %v1957
      %v1962 = vmax.f32 %v1948, %v1958
      %v1963 = vmax.f32 %v1949, %v1959
      %1964 = vrot.lane.b32.xlu0 %v1899, 26
      %v1965 = vpop.permute.xlu0 %1964
      %1966 = vrot.lane.b32.xlu0 %v1900, 26
      %v1967 = vpop.permute.xlu0 %1966
      %1968 = vrot.lane.b32.xlu0 %v1901, 26
      %v1969 = vpop.permute.xlu0 %1968
      %1970 = vrot.lane.b32.xlu0 %v1902, 26
      %v1971 = vpop.permute.xlu0 %1970
      %v1972 = vsel %vm1592, %v1965, %v1967
      %v1973 = vsel %vm1592, %v1969, %v1971
      %v1976 = vmax.f32 %v1962, %v1972
      %v1977 = vmax.f32 %v1963, %v1973
      %1979 = vrot.lane.b32.xlu0 %v1900, 64
      %v1980 = vpop.permute.xlu0 %1979
      %1981 = vrot.lane.b32.xlu0 %v1901, 64
      %v1982 = vpop.permute.xlu0 %1981
      %1983 = vrot.lane.b32.xlu0 %v1902, 64
      %v1984 = vpop.permute.xlu0 %1983
      %1985 = vrot.lane.b32.xlu0 %v1903, 64
      %v1986 = vpop.permute.xlu0 %1985
      %v1987 = vsel %vm710, %v1980, %v1982
      %v1988 = vsel %vm710, %v1984, %v1986
      %v1991 = vmax.f32 %v1976, %v1987
      %v1992 = vmax.f32 %v1977, %v1988
      %1993 = vrot.lane.b32.xlu0 %v1900, 61
      %v1994 = vpop.permute.xlu0 %1993
      %1995 = vrot.lane.b32.xlu0 %v1901, 61
      %v1996 = vpop.permute.xlu0 %1995
      %1997 = vrot.lane.b32.xlu0 %v1902, 61
      %v1998 = vpop.permute.xlu0 %1997
      %1999 = vrot.lane.b32.xlu0 %v1903, 61
      %v2000 = vpop.permute.xlu0 %1999
      %v2001 = vsel %vm1640, %v1994, %v1996
      %v2002 = vsel %vm1640, %v1998, %v2000
      %v2005 = vmax.f32 %v1991, %v2001
      %v2006 = vmax.f32 %v1992, %v2002
      %2007 = vrot.lane.b32.xlu0 %v1900, 58
      %v2008 = vpop.permute.xlu0 %2007
      %2009 = vrot.lane.b32.xlu0 %v1901, 58
      %v2010 = vpop.permute.xlu0 %2009
      %2011 = vrot.lane.b32.xlu0 %v1902, 58
      %v2012 = vpop.permute.xlu0 %2011
      %2013 = vrot.lane.b32.xlu0 %v1903, 58
      %v2014 = vpop.permute.xlu0 %2013
      %v2015 = vsel %vm1664, %v2008, %v2010
      %v2016 = vsel %vm1664, %v2012, %v2014
      %v2019 = vmax.f32 %v2005, %v2015
      %v2020 = vmax.f32 %v2006, %v2016
      %2022 = vrot.lane.b32.xlu0 %v2019, 119
      %v2023 = vpop.permute.xlu0 %2022
      %2026 = vrot.lane.b32.xlu0 %v2020, 96
      %v2027 = vpop.permute.xlu0 %2026
      %2029 = vrot.lane.b32.xlu0 %v2020, 87
      %v2030 = vpop.permute.xlu0 %2029
      %v2032 = vld [vmem:[%s5] sm:$0xff]
      %v2033 = vld [vmem:[%s5 + $0x8] sm:$0xff]
      %v2034 = vld [vmem:[%s5 + $0x10] sm:$0xf]
      %v2035 = vld [vmem:[%s6] sm:$0xff]
      %v2036 = vld [vmem:[%s6 + $0x8] sm:$0xff]
      %v2037 = vld [vmem:[%s6 + $0x10] sm:$0xf]
      %v2039 = vsel %vm1538, %v2032, 0
      %v2042 = vsel %vm1538, %v2033, 0
      %v2045 = vsel %vm1538, %v2034, 0
      %2047 = vmatprep.subr.mxu0 0.0
      %2048 = vmatpush1.msra.mxu0 0.0
      %2049 = vmatprep.subr.mxu0 0.0
      %2050 = vmatpush1.msra.mxu0 0.0
      %2051 = vmatprep.subr.mxu0 0.0
      %2052 = vmatpush1.msra.mxu0 0.0
      %2053 = vmatprep.subr.mxu0 0.0
      %2054 = vmatpush1.msra.mxu0 0.0
      %2055 = vmatprep.subr.mxu0 0.0
      %2056 = vmatpush1.msra.mxu0 0.0
      %2057 = vmatprep.subr.mxu0 0.0
      %2058 = vmatpush1.msra.mxu0 0.0
      %2059 = vmatprep.subr.mxu0 0.0
      %2060 = vmatpush1.msra.mxu0 0.0
      %2061 = vmatprep.subr.mxu0 0.0
      %2062 = vmatpush1.msra.mxu0 0.0
      %2063 = vmatprep.subr.mxu0 0.0
      %2064 = vmatpush1.msra.mxu0 0.0
      %2065 = vmatprep.subr.mxu0 0.0
      %2066 = vmatpush1.msra.mxu0 0.0
      %2067 = vmatprep.subr.mxu0 0.0
      %2068 = vmatpush1.msra.mxu0 0.0
      %2069 = vmatprep.subr.mxu0 0.0
      %2070 = vmatpush1.msra.mxu0 0.0
      %2071 = vmatprep.subr.mxu0 0.0
      %2072 = vmatpush1.msra.mxu0 %v2030
      %2073 = vmatprep.subr.mxu0 0.0
      %2074 = vmatpush1.msra.mxu0 %v2027
      %2075 = vmatprep.subr.mxu0 0.0
      %2076 = vmatpush1.msra.mxu0 %v2023
      %2077 = vmatprep.subr.mxu0 0.0
      %2078 = vmatpush1.msra.mxu0 %v2019
      %2079 = vmatprep.subr.mxu0 0.0
      %2080 = vmatpush2.msra.mxu0 0.0
      %2081 = vmatprep.subr.mxu0 0.0
      %2082 = vmatpush2.msra.mxu0 0.0
      %2083 = vmatprep.subr.mxu0 0.0
      %2084 = vmatpush2.msra.mxu0 0.0
      %2085 = vmatprep.subr.mxu0 0.0
      %2086 = vmatpush2.msra.mxu0 0.0
      %2087 = vmatprep.subr.mxu0 0.0
      %2088 = vmatpush2.msra.mxu0 0.0
      %2089 = vmatprep.subr.mxu0 0.0
      %2090 = vmatpush2.msra.mxu0 0.0
      %2091 = vmatprep.subr.mxu0 0.0
      %2092 = vmatpush2.msra.mxu0 0.0
      %2093 = vmatprep.subr.mxu0 0.0
      %2094 = vmatpush2.msra.mxu0 0.0
      %2095 = vmatprep.subr.mxu0 0.0
      %2096 = vmatpush2.msra.mxu0 0.0
      %2097 = vmatprep.subr.mxu0 0.0
      %2098 = vmatpush2.msra.mxu0 0.0
      %2099 = vmatprep.subr.mxu0 0.0
      %2100 = vmatpush2.msra.mxu0 0.0
      %2101 = vmatprep.subr.mxu0 0.0
      %2102 = vmatpush2.msra.mxu0 0.0
      %2103 = vmatprep.subr.mxu0 0.0
      %2104 = vmatpush2.msra.mxu0 0.0
      %2105 = vmatprep.subr.mxu0 0.0
      %2106 = vmatpush2.msra.mxu0 0.0
      %2107 = vmatprep.subr.mxu0 0.0
      %2108 = vmatpush2.msra.mxu0 0.0
      %2109 = vmatprep.subr.mxu0 0.0
      %2110 = vmatpush2.msra.mxu0 0.0
      %2111 = vmatprep.mubr.f32.mxu0 0.0
      %2112 = vmatmul.mubr.f32.gmra.mxu0 %v2039
      %v2113 = vpop.f32.mrf.mxu0
      %v2114 = vadd.f32 %v2035, %v2113
      %v2115 = vpop.f32.mrf.mxu0
      %2116 = vmatprep.mubr.f32.mxu0 0.0
      %2117 = vmatmul.mubr.f32.gmra.mxu0 %v2042
      %v2118 = vpop.f32.mrf.mxu0
      %v2119 = vadd.f32 %v2036, %v2118
      %v2120 = vpop.f32.mrf.mxu0
      %2121 = vmatprep.mubr.f32.mxu0 0.0
      %2122 = vmatmul.mubr.f32.gmra.mxu0 %v2045
      %v2123 = vpop.f32.mrf.mxu0
      %v2124 = vadd.f32 %v2037, %v2123
      %v2125 = vpop.f32.mrf.mxu0
      %2126 = vdwg.mxu0
      %v2127 = vtanh.pop %v2114
      %v2128 = vtanh.pop %v2119
      %v2129 = vtanh.pop %v2124
      %v2130 = vld [vmem:[%s7] sm:$0x3]
      %v2131 = vld [vmem:[%s8] sm:$0x3]
      %vm2132 = vcmask 162816
      %v2134 = vsel %vm2132, %v2130, 0
      %vm2136 = vcmask 1043456
      %v2138 = vsel %vm2136, %v2129, 0
      %2140 = vmatprep.subr.mxu0 0.0
      %2141 = vmatpush1.msra.mxu0 0.0
      %2142 = vmatprep.subr.mxu0 0.0
      %2143 = vmatpush1.msra.mxu0 0.0
      %2144 = vmatprep.subr.mxu0 0.0
      %2145 = vmatpush1.msra.mxu0 0.0
      %2146 = vmatprep.subr.mxu0 0.0
      %2147 = vmatpush1.msra.mxu0 0.0
      %2148 = vmatprep.subr.mxu0 0.0
      %2149 = vmatpush1.msra.mxu0 0.0
      %2150 = vmatprep.subr.mxu0 0.0
      %2151 = vmatpush1.msra.mxu0 0.0
      %2152 = vmatprep.subr.mxu0 0.0
      %2153 = vmatpush1.msra.mxu0 0.0
      %2154 = vmatprep.subr.mxu0 0.0
      %2155 = vmatpush1.msra.mxu0 0.0
      %2156 = vmatprep.subr.mxu0 0.0
      %2157 = vmatpush1.msra.mxu0 0.0
      %2158 = vmatprep.subr.mxu0 0.0
      %2159 = vmatpush1.msra.mxu0 0.0
      %2160 = vmatprep.subr.mxu0 0.0
      %2161 = vmatpush1.msra.mxu0 0.0
      %2162 = vmatprep.subr.mxu0 0.0
      %2163 = vmatpush1.msra.mxu0 0.0
      %2164 = vmatprep.subr.mxu0 0.0
      %2165 = vmatpush1.msra.mxu0 0.0
      %2166 = vmatprep.subr.mxu0 0.0
      %2167 = vmatpush1.msra.mxu0 %v2138
      %2168 = vmatprep.subr.mxu0 0.0
      %2169 = vmatpush1.msra.mxu0 %v2128
      %2170 = vmatprep.subr.mxu0 0.0
      %2171 = vmatpush1.msra.mxu0 %v2127
      %2172 = vmatprep.subr.mxu0 0.0
      %2173 = vmatpush2.msra.mxu0 0.0
      %2174 = vmatprep.subr.mxu0 0.0
      %2175 = vmatpush2.msra.mxu0 0.0
      %2176 = vmatprep.subr.mxu0 0.0
      %2177 = vmatpush2.msra.mxu0 0.0
      %2178 = vmatprep.subr.mxu0 0.0
      %2179 = vmatpush2.msra.mxu0 0.0
      %2180 = vmatprep.subr.mxu0 0.0
      %2181 = vmatpush2.msra.mxu0 0.0
      %2182 = vmatprep.subr.mxu0 0.0
      %2183 = vmatpush2.msra.mxu0 0.0
      %2184 = vmatprep.subr.mxu0 0.0
      %2185 = vmatpush2.msra.mxu0 0.0
      %2186 = vmatprep.subr.mxu0 0.0
      %2187 = vmatpush2.msra.mxu0 0.0
      %2188 = vmatprep.subr.mxu0 0.0
      %2189 = vmatpush2.msra.mxu0 0.0
      %2190 = vmatprep.subr.mxu0 0.0
      %2191 = vmatpush2.msra.mxu0 0.0
      %2192 = vmatprep.subr.mxu0 0.0
      %2193 = vmatpush2.msra.mxu0 0.0
      %2194 = vmatprep.subr.mxu0 0.0
      %2195 = vmatpush2.msra.mxu0 0.0
      %2196 = vmatprep.subr.mxu0 0.0
      %2197 = vmatpush2.msra.mxu0 0.0
      %2198 = vmatprep.subr.mxu0 0.0
      %2199 = vmatpush2.msra.mxu0 0.0
      %2200 = vmatprep.subr.mxu0 0.0
      %2201 = vmatpush2.msra.mxu0 0.0
      %2202 = vmatprep.subr.mxu0 0.0
      %2203 = vmatpush2.msra.mxu0 0.0
      %2204 = vmatprep.mubr.f32.mxu0 0.0
      %2205 = vmatmul.mubr.f32.gmra.mxu0 %v2134
      %v2206 = vpop.f32.mrf.mxu0
      %v2207 = vadd.f32 %v2131, %v2206
      %v2208 = vpop.f32.mrf.mxu0
      %2209 = vdwg.mxu0
      %vm2210 = vcmask 1024
      %v2211 = vsel %vm2210, %v2207, -inf
      %v2212 = vrot.slane %v2211, 4
      %v2213 = vmax.f32 %v2211, %v2212
      %v2214 = vrot.slane %v2213, 2
      %v2215 = vmax.f32 %v2213, %v2214
      %v2216 = vrot.slane %v2215, 1
      %v2217 = vmax.f32 %v2215, %v2216
      %v2218 = vsub.f32 %v2207, %v2217
      %v2219 = vmul.f32 %v2218, 1.442695
      %v2220 = vpow.pop %v2219
      %v2221 = vsel %vm2210, %v2220, 0.0
      %v2222 = vrot.slane %v2221, 4
      %v2223 = vadd.f32 %v2221, %v2222
      %v2224 = vrot.slane %v2223, 2
      %v2225 = vadd.f32 %v2223, %v2224
      %v2226 = vrot.slane %v2225, 1
      %v2227 = vadd.f32 %v2225, %v2226
      %v2228 = vrcp.pop %v2227
      %v2229 = vmul.f32 %v2220, %v2228
      %2230 = vst.msk [vmem:[%s330] sm:$0x3] %vm2210, %v2229
      %p2231 = scmp.lt.s32.totalorder %s20, 1
      %s2232 = scalar_select %p2231, %s20, 1
      %s2233 = smul.addr %s2232, 2
      %s2234 = scalar_lea.vmem %s9, %s2233
      // Predicated region
      $region57: #{cnn_forward.1} parent=55 // pred_check
        %p2235 = pneg %p232
      $region58: #{cnn_forward.1} parent=55 // pred_check_branch
        %2237 = sbr.rel (%p2235) target = $region60
      $region59: #{cnn_forward.1} parent=55 // pred_region
        _
      $region60: #{cnn_forward.1} parent=55 // pred_fallthru
        _
    $region56: #{cnn_forward.1} parent=5 // pred_fallthru
      _
    %p2238 = scmp.le.s32.totalorder 2, %s15
    // Predicated region
    $region61: #{cnn_forward.1} parent=5 // pred_check
      %p2239 = pneg %p2238
    $region62: #{cnn_forward.1} parent=5 // pred_check_branch
      %2241 = sbr.rel (%p2239) target = $region64
    $region63: #{cnn_forward.1} parent=5 // pred_region
      %s2242 = ssub.s32 %s15, 2
      // Predicated region
      $region65: #{cnn_forward.1} parent=63 // pred_check
        %p2243 = pneg %p238
      $region66: #{cnn_forward.1} parent=63 // pred_check_branch
        %2245 = sbr.rel (%p2243) target = $region68
      $region67: #{cnn_forward.1} parent=63 // pred_region
        %p2246 = scmp.lt.s32.totalorder %s21, 1
        %s2247 = scalar_select %p2246, %s21, 1
        %s2248 = smul.addr %s2247, 2
        %s2249 = scalar_lea.vmem %s9, %s2248
      $region68: #{cnn_forward.1} parent=63 // pred_fallthru
        _
    $region64: #{cnn_forward.1} parent=5 // pred_fallthru
      _
  $region6: #{cnn_forward.1} parent=0 // loop_footer
    %s19 = sadd.s32 1, %s15
  $region7: #{cnn_forward.1} parent=0 // loop_footer_branch
    %14 = sbr.rel target = $region3
  $region8: #{cnn_forward.1} parent=0 // loop_exit
    _

</llo_original>
